<compile_context>
chip_gen: v6e
topology: v6e:2x2x1
jax: 0.10.0
libtpu: 0.0.40
codegen_flags: <defaults>
</compile_context>

<pallas_src>
import jax
import jax.numpy as jnp
from jax import lax
from jax.experimental import pallas as pl
from jax.experimental.pallas import tpu as pltpu


_COMPUTE_DTYPE = jnp.bfloat16          # MXU input dtype; accumulation stays f32
_VMEM_LIMIT = 64 * 1024 * 1024         # fits v5e/v6e (128 MiB) and v7x (64 MiB)


def _pick_tile(n, candidates=(256, 128)):
    """Largest candidate that evenly divides n, else a single full-extent block.

    256-multiples fill the v6e/v7x 256x256 MXU; 128 still divides and is fine
    on v5e.  Falling back to the full extent keeps odd/small shapes legal
    (block dims equal to the full array dims are always allowed).
    """
    for c in candidates:
        if n % c == 0:
            return c
    return n


# ---------------------------------------------------------------------------
# Kernel 1: fused Q/K/V projection
# ---------------------------------------------------------------------------
def _qkv_proj_kernel(q_ref, k_ref, v_ref, w_ref, b_ref, out_ref, acc_ref):
    """One grid step = (batch b, L-tile l, weight-K-tile k).

    q/k/v_ref: (1, tl, dk) f32      w_ref: (3, dk, D) bf16   b_ref: (3, D) f32
    out_ref:   (3, 1, tl, D) bf16   acc_ref: (3, tl, D) f32 scratch
    """
    kk = pl.program_id(2)

    @pl.when(kk == 0)
    def _():
        acc_ref[...] = jnp.zeros_like(acc_ref)

    x_refs = (q_ref, k_ref, v_ref)
    for s in range(3):
        x = x_refs[s][0].astype(_COMPUTE_DTYPE)                # (tl, dk)
        acc_ref[s] = acc_ref[s] + jnp.dot(
            x, w_ref[s], preferred_element_type=jnp.float32)

    @pl.when(kk == pl.num_programs(2) - 1)
    def _():
        bias = b_ref[...].astype(jnp.float32)                  # (3, D)
        for s in range(3):
            out_ref[s, 0] = (acc_ref[s] + bias[s:s + 1, :]).astype(out_ref.dtype)


# ---------------------------------------------------------------------------
# Kernel 2: flash attention (online softmax over key tiles)
# ---------------------------------------------------------------------------
def _make_flash_kernel(scale):
    def kernel(q_ref, k_ref, v_ref, o_ref, m_ref, l_ref, acc_ref):
        ki = pl.program_id(3)

        @pl.when(ki == 0)
        def _():
            m_ref[...] = jnp.full_like(m_ref, -jnp.inf)
            l_ref[...] = jnp.zeros_like(l_ref)
            acc_ref[...] = jnp.zeros_like(acc_ref)

        q = q_ref[0, 0]                                        # (tq, dh) bf16
        k = k_ref[0, 0]                                        # (tk, dh) bf16
        v = v_ref[0, 0]                                        # (tk, dh) bf16

        # q @ k^T without an explicit transpose; lane dim of scores is tk.
        s = lax.dot_general(q, k, (((1,), (1,)), ((), ())),
                            preferred_element_type=jnp.float32) * scale

        m_prev = m_ref[...]                                    # (tq, 1)
        m_new = jnp.maximum(m_prev, jnp.max(s, axis=-1, keepdims=True))
        alpha = jnp.exp(m_prev - m_new)                        # (tq, 1)
        p = jnp.exp(s - m_new)                                 # (tq, tk)

        l_ref[...] = alpha * l_ref[...] + jnp.sum(p, axis=-1, keepdims=True)
        acc_ref[...] = alpha * acc_ref[...] + jnp.dot(
            p.astype(v.dtype), v, preferred_element_type=jnp.float32)
        m_ref[...] = m_new

        @pl.when(ki == pl.num_programs(3) - 1)
        def _():
            o_ref[0, 0] = (acc_ref[...] *
                           pl.reciprocal(l_ref[...], approx=True)).astype(o_ref.dtype)

    return kernel


# ---------------------------------------------------------------------------
# Kernel 3: final projection with head merge folded into the matmul
# ---------------------------------------------------------------------------
def _out_proj_kernel(ctx_ref, w_ref, b_ref, o_ref, acc_ref):
    """One grid step = (batch b, Lq-tile qi, head h); reduce over h.

    ctx_ref: (1, 1, tq, dh) bf16   w_ref: (1, dh, D) bf16   b_ref: (1, D) f32
    o_ref:   (1, tq, D)            acc_ref: (tq, D) f32 scratch
    """
    h = pl.program_id(2)

    @pl.when(h == 0)
    def _():
        acc_ref[...] = jnp.zeros_like(acc_ref)

    acc_ref[...] += jnp.dot(ctx_ref[0, 0], w_ref[0],
                            preferred_element_type=jnp.float32)

    @pl.when(h == pl.num_programs(2) - 1)
    def _():
        o_ref[0] = (acc_ref[...] + b_ref[...].astype(jnp.float32)).astype(o_ref.dtype)


# ---------------------------------------------------------------------------
# Wrapper
# ---------------------------------------------------------------------------
def multi_head_attention(query, key, value, params, heads_count):
    """Eval-mode, unmasked self-attention forward.  query/key/value: (B, L, D) f32."""
    B, Lq, D = query.shape
    _, Lk, _ = key.shape
    assert key.shape == value.shape and key.shape[0] == B and key.shape[2] == D
    assert D % heads_count == 0
    assert Lq == Lk, "fused self-attention path expects equal query/key lengths"
    # TODO(synk): masking, training-mode dropout, layer_cache and memory-attention
    # mode of the PyTorch module are not implemented here.

    H = heads_count
    dh = D // H
    L = Lq
    scale = 1.0 / float(dh) ** 0.5

    tl = _pick_tile(L)                       # L tile for the projections
    tq = _pick_tile(Lq)                      # query tile for attention
    tk = _pick_tile(Lk)                      # key/value tile for attention
    dk = _pick_tile(D, (512, 256, 128))      # contraction tile for the weights
    n_l, n_q, n_k, n_d = L // tl, Lq // tq, Lk // tk, D // dk

    # ---- 1) fused QKV projection: (B, L, D) -> (3, B, L, D) bf16 -------------
    wqkv = jnp.stack([params["wq"], params["wk"], params["wv"]]).astype(_COMPUTE_DTYPE)
    bqkv = jnp.concatenate([params["bq"], params["bk"], params["bv"]], axis=0)  # (3, D)

    proj_cost = pl.CostEstimate(
        flops=2 * 3 * B * L * D * D,
        transcendentals=0,
        bytes_accessed=3 * B * L * D * query.dtype.itemsize
        + 3 * D * D * 2 + 3 * D * 4 + 3 * B * L * D * 2)

    act_spec = pl.BlockSpec((1, tl, dk), lambda b, l, k: (b, l, k))
    qkv = pl.pallas_call(
        _qkv_proj_kernel,
        out_shape=jax.ShapeDtypeStruct((3, B, L, D), _COMPUTE_DTYPE),
        grid_spec=pltpu.PrefetchScalarGridSpec(
            num_scalar_prefetch=0,
            grid=(B, n_l, n_d),
            in_specs=[
                act_spec, act_spec, act_spec,
                pl.BlockSpec((3, dk, D), lambda b, l, k: (0, k, 0)),
                pl.BlockSpec((3, D), lambda b, l, k: (0, 0)),
            ],
            out_specs=pl.BlockSpec((3, 1, tl, D), lambda b, l, k: (0, b, l, 0)),
            scratch_shapes=[pltpu.VMEM((3, tl, D), jnp.float32)],
        ),
        compiler_params=pltpu.CompilerParams(
            dimension_semantics=("parallel", "parallel", "arbitrary"),
            vmem_limit_bytes=_VMEM_LIMIT),
        cost_estimate=proj_cost,
    )(query, key, value, wqkv, bqkv)

    # Head split done in the wrapper (layout plumbing, kept out of the kernels):
    # (B, L, D) -> (B, H, L, dh), so the attention kernel's lane dim is dh (full)
    # and its matmul lane dims are the Lq/Lk tiles.
    def to_heads(x):
        return x.reshape(B, L, H, dh).transpose(0, 2, 1, 3)

    qh, kh, vh = to_heads(qkv[0]), to_heads(qkv[1]), to_heads(qkv[2])

    # ---- 2) flash attention -------------------------------------------------
    attn_cost = pl.CostEstimate(
        flops=4 * B * H * Lq * Lk * dh,
        transcendentals=B * H * Lq * Lk,
        bytes_accessed=2 * (2 * B * H * Lq * dh + 2 * B * H * Lk * dh))

    ctx = pl.pallas_call(
        _make_flash_kernel(scale),
        out_shape=jax.ShapeDtypeStruct((B, H, Lq, dh), _COMPUTE_DTYPE),
        grid_spec=pltpu.PrefetchScalarGridSpec(
            num_scalar_prefetch=0,
            grid=(B, H, n_q, n_k),
            in_specs=[
                pl.BlockSpec((1, 1, tq, dh), lambda b, h, qi, ki: (b, h, qi, 0)),
                pl.BlockSpec((1, 1, tk, dh), lambda b, h, qi, ki: (b, h, ki, 0)),
                pl.BlockSpec((1, 1, tk, dh), lambda b, h, qi, ki: (b, h, ki, 0)),
            ],
            out_specs=pl.BlockSpec((1, 1, tq, dh), lambda b, h, qi, ki: (b, h, qi, 0)),
            scratch_shapes=[
                pltpu.VMEM((tq, 1), jnp.float32),   # running max m
                pltpu.VMEM((tq, 1), jnp.float32),   # running sum l
                pltpu.VMEM((tq, dh), jnp.float32),  # output accumulator
            ],
        ),
        compiler_params=pltpu.CompilerParams(
            dimension_semantics=("parallel", "parallel", "parallel", "arbitrary"),
            vmem_limit_bytes=_VMEM_LIMIT),
        cost_estimate=attn_cost,
    )(qh, kh, vh)

    # ---- 3) final projection (head merge folded into the matmul) -------------
    wf_h = params["wf"].reshape(H, dh, D).astype(_COMPUTE_DTYPE)   # (H, dh, D)
    bf = params["bf"]                                              # (1, D) f32

    fin_cost = pl.CostEstimate(
        flops=2 * B * Lq * D * D,
        transcendentals=0,
        bytes_accessed=B * H * Lq * dh * 2 + D * D * 2 + D * 4
        + B * Lq * D * query.dtype.itemsize)

    out = pl.pallas_call(
        _out_proj_kernel,
        out_shape=jax.ShapeDtypeStruct((B, Lq, D), query.dtype),
        grid_spec=pltpu.PrefetchScalarGridSpec(
            num_scalar_prefetch=0,
            grid=(B, n_q, H),
            in_specs=[
                pl.BlockSpec((1, 1, tq, dh), lambda b, qi, h: (b, h, qi, 0)),
                pl.BlockSpec((1, dh, D), lambda b, qi, h: (h, 0, 0)),
                pl.BlockSpec((1, D), lambda b, qi, h: (0, 0)),
            ],
            out_specs=pl.BlockSpec((1, tq, D), lambda b, qi, h: (b, qi, 0)),
            scratch_shapes=[pltpu.VMEM((tq, D), jnp.float32)],
        ),
        compiler_params=pltpu.CompilerParams(
            dimension_semantics=("parallel", "parallel", "arbitrary"),
            vmem_limit_bytes=_VMEM_LIMIT),
        cost_estimate=fin_cost,
    )(ctx, wf_h, bf)

    return out


# ---------------------------------------------------------------------------
# Pure-JAX f32 reference mirroring the PyTorch forward (eval mode)
# ---------------------------------------------------------------------------
def reference_mha(query, key, value, params, heads_count):
    B, Lq, D = query.shape
    _, Lk, _ = key.shape
    d_head = D // heads_count

    qp = query @ params["wq"] + params["bq"][0]
    kp = key @ params["wk"] + params["bk"][0]
    vp = value @ params["wv"] + params["bv"][0]

    qh = qp.reshape(B, Lq, heads_count, d_head).transpose(0, 2, 1, 3)
    kh = kp.reshape(B, Lk, heads_count, d_head).transpose(0, 2, 1, 3)
    vh = vp.reshape(B, Lk, heads_count, d_head).transpose(0, 2, 1, 3)

    scores = jnp.einsum('bhqd,bhkd->bhqk', qh, kh) / jnp.sqrt(d_head).astype(jnp.float32)
    attn = jax.nn.softmax(scores, axis=3)
    ctx = jnp.einsum('bhqk,bhkd->bhqd', attn, vh)
    ctx = ctx.transpose(0, 2, 1, 3).reshape(B, Lq, D)
    return ctx @ params["wf"] + params["bf"][0]


if __name__ == "__main__":
    # Small, deterministic config that still exercises multiple Lq / Lk tiles
    # (seq=512 with 256-wide tiles -> 2 query tiles, 2 key tiles per head).
    heads_count = 4
    d_model = 128
    batch = 2
    seq = 512
    dropout_prob = 0.1  # eval mode -> identity

    key0 = jax.random.PRNGKey(0)
    keys = jax.random.split(key0, 12)

    def init_w(k):
        return (jax.random.normal(k, (d_model, d_model), jnp.float32)
                * (1.0 / jnp.sqrt(d_model)))

    def init_b(k):
        return jax.random.normal(k, (1, d_model), jnp.float32) * 0.01

    params = {
        "wq": init_w(keys[0]), "bq": init_b(keys[1]),
        "wk": init_w(keys[2]), "bk": init_b(keys[3]),
        "wv": init_w(keys[4]), "bv": init_b(keys[5]),
        "wf": init_w(keys[6]), "bf": init_b(keys[7]),
    }

    query = jax.random.normal(keys[8], (batch, seq, d_model), jnp.float32)
    key_in = jax.random.normal(keys[9], (batch, seq, d_model), jnp.float32)
    value = jax.random.normal(keys[10], (batch, seq, d_model), jnp.float32)

    out = multi_head_attention(query, key_in, value, params, heads_count)
    out = jax.block_until_ready(out)

    ref = reference_mha(query, key_in, value, params, heads_count)
    assert out.shape == (batch, seq, d_model)
    max_err = float(jnp.max(jnp.abs(out - ref)))
    # bf16 MXU inputs with f32 accumulation -> expected ~1e-3 abs error vs f32 ref.
    assert jnp.allclose(out, ref, atol=2e-2, rtol=2e-2), (
        f"mismatch vs reference (max abs err {max_err})")

    print("KERNEL_OK")
</pallas_src>

<mosaic_0001>
module attributes {stable_mosaic.version = 11 : i64} {
  func.func @_qkv_proj_kernel(%arg0: i32, %arg1: i32, %arg2: i32, %arg3: memref<1x256x128xf32, #tpu.memory_space<vmem>>, %arg4: memref<1x256x128xf32, #tpu.memory_space<vmem>>, %arg5: memref<1x256x128xf32, #tpu.memory_space<vmem>>, %arg6: memref<3x128x128xbf16, #tpu.memory_space<vmem>>, %arg7: memref<3x128xf32, #tpu.memory_space<vmem>>, %arg8: memref<3x1x256x128xbf16, #tpu.memory_space<vmem>>, %arg9: memref<3x256x128xf32, #tpu.memory_space<vmem>>) attributes {dimension_semantics = [#tpu.dimension_semantics<parallel>, #tpu.dimension_semantics<parallel>, #tpu.dimension_semantics<arbitrary>], iteration_bounds = array<i64: 2, 2, 1>, scalar_prefetch = 0 : i64, scratch_operands = 1 : i64, tpu.core_type = #tpu.core_type<tc>, window_params = [{transform_indices = @transform_0, window_bounds = array<i64: 1, 256, 128>}, {transform_indices = @transform_1, window_bounds = array<i64: 1, 256, 128>}, {transform_indices = @transform_2, window_bounds = array<i64: 1, 256, 128>}, {transform_indices = @transform_3, window_bounds = array<i64: 3, 128, 128>}, {pipeline_mode = #tpu.pipeline_mode<synchronous>, transform_indices = @transform_4, window_bounds = array<i64: 3, 128>}, {transform_indices = @transform_5, window_bounds = array<i64: 3, 1, 256, 128>}]} {
    %c0_i32 = arith.constant 0 : i32
    %0 = arith.cmpi eq, %arg2, %c0_i32 : i32
    %1 = arith.extui %0 : i1 to i32
    %c0_i32_0 = arith.constant 0 : i32
    %2 = arith.cmpi ne, %1, %c0_i32_0 : i32
    scf.if %2 {
      %cst_38 = arith.constant 0.000000e+00 : f32
      %42 = vector.broadcast %cst_38 : f32 to vector<3x256x128xf32>
      %c0_39 = arith.constant 0 : index
      %c0_40 = arith.constant 0 : index
      %c0_41 = arith.constant 0 : index
      %43 = vector.load %arg9[%c0_39, %c0_40, %c0_41] : memref<3x256x128xf32, #tpu.memory_space<vmem>>, vector<3x256x128xf32>
      tpu.vector_store %arg9[%c0_39, %c0_40, %c0_41], %42 {strides = array<i32>} : memref<3x256x128xf32, #tpu.memory_space<vmem>>, vector<3x256x128xf32>,
    } else {
    }
    %c0 = arith.constant 0 : index
    %c0_1 = arith.constant 0 : index
    %c0_2 = arith.constant 0 : index
    %3 = vector.load %arg3[%c0, %c0_1, %c0_2] : memref<1x256x128xf32, #tpu.memory_space<vmem>>, vector<1x256x128xf32>
    %4 = vector.shape_cast %3 : vector<1x256x128xf32> to vector<256x128xf32>
    %5 = arith.truncf %4 : vector<256x128xf32> to vector<256x128xbf16>
    %c0_3 = arith.constant 0 : index
    %c0_4 = arith.constant 0 : index
    %c0_5 = arith.constant 0 : index
    %6 = vector.load %arg9[%c0_3, %c0_4, %c0_5] : memref<3x256x128xf32, #tpu.memory_space<vmem>>, vector<1x256x128xf32>
    %7 = vector.shape_cast %6 : vector<1x256x128xf32> to vector<256x128xf32>
    %c0_6 = arith.constant 0 : index
    %c0_7 = arith.constant 0 : index
    %c0_8 = arith.constant 0 : index
    %8 = vector.load %arg6[%c0_6, %c0_7, %c0_8] : memref<3x128x128xbf16, #tpu.memory_space<vmem>>, vector<1x128x128xbf16>
    %9 = vector.shape_cast %8 : vector<1x128x128xbf16> to vector<128x128xbf16>
    %cst = arith.constant dense<0.000000e+00> : vector<256x128xf32>
    %10 = tpu.matmul %5, %9, %cst {dimension_numbers = #tpu.dot_dimension_numbers<[1], [0], [0], [1], [0, 0, 1, 1], [], []>} : vector<256x128xbf16>, vector<128x128xbf16>, vector<256x128xf32> -> vector<256x128xf32>
    %11 = arith.addf %7, %10 : vector<256x128xf32>
    %c0_9 = arith.constant 0 : index
    %c0_10 = arith.constant 0 : index
    %c0_11 = arith.constant 0 : index
    %12 = vector.load %arg9[%c0_9, %c0_10, %c0_11] : memref<3x256x128xf32, #tpu.memory_space<vmem>>, vector<1x256x128xf32>
    %13 = vector.shape_cast %12 : vector<1x256x128xf32> to vector<256x128xf32>
    %14 = vector.shape_cast %11 : vector<256x128xf32> to vector<1x256x128xf32>
    tpu.vector_store %arg9[%c0_9, %c0_10, %c0_11], %14 {strides = array<i32>} : memref<3x256x128xf32, #tpu.memory_space<vmem>>, vector<1x256x128xf32>,
    %c0_12 = arith.constant 0 : index
    %c0_13 = arith.constant 0 : index
    %c0_14 = arith.constant 0 : index
    %15 = vector.load %arg4[%c0_12, %c0_13, %c0_14] : memref<1x256x128xf32, #tpu.memory_space<vmem>>, vector<1x256x128xf32>
    %16 = vector.shape_cast %15 : vector<1x256x128xf32> to vector<256x128xf32>
    %17 = arith.truncf %16 : vector<256x128xf32> to vector<256x128xbf16>
    %c1 = arith.constant 1 : index
    %c0_15 = arith.constant 0 : index
    %c0_16 = arith.constant 0 : index
    %18 = vector.load %arg9[%c1, %c0_15, %c0_16] : memref<3x256x128xf32, #tpu.memory_space<vmem>>, vector<1x256x128xf32>
    %19 = vector.shape_cast %18 : vector<1x256x128xf32> to vector<256x128xf32>
    %c1_17 = arith.constant 1 : index
    %c0_18 = arith.constant 0 : index
    %c0_19 = arith.constant 0 : index
    %20 = vector.load %arg6[%c1_17, %c0_18, %c0_19] : memref<3x128x128xbf16, #tpu.memory_space<vmem>>, vector<1x128x128xbf16>
    %21 = vector.shape_cast %20 : vector<1x128x128xbf16> to vector<128x128xbf16>
    %cst_20 = arith.constant dense<0.000000e+00> : vector<256x128xf32>
    %22 = tpu.matmul %17, %21, %cst_20 {dimension_numbers = #tpu.dot_dimension_numbers<[1], [0], [0], [1], [0, 0, 1, 1], [], []>} : vector<256x128xbf16>, vector<128x128xbf16>, vector<256x128xf32> -> vector<256x128xf32>
    %23 = arith.addf %19, %22 : vector<256x128xf32>
    %c1_21 = arith.constant 1 : index
    %c0_22 = arith.constant 0 : index
    %c0_23 = arith.constant 0 : index
    %24 = vector.load %arg9[%c1_21, %c0_22, %c0_23] : memref<3x256x128xf32, #tpu.memory_space<vmem>>, vector<1x256x128xf32>
    %25 = vector.shape_cast %24 : vector<1x256x128xf32> to vector<256x128xf32>
    %26 = vector.shape_cast %23 : vector<256x128xf32> to vector<1x256x128xf32>
    tpu.vector_store %arg9[%c1_21, %c0_22, %c0_23], %26 {strides = array<i32>} : memref<3x256x128xf32, #tpu.memory_space<vmem>>, vector<1x256x128xf32>,
    %c0_24 = arith.constant 0 : index
    %c0_25 = arith.constant 0 : index
    %c0_26 = arith.constant 0 : index
    %27 = vector.load %arg5[%c0_24, %c0_25, %c0_26] : memref<1x256x128xf32, #tpu.memory_space<vmem>>, vector<1x256x128xf32>
    %28 = vector.shape_cast %27 : vector<1x256x128xf32> to vector<256x128xf32>
    %29 = arith.truncf %28 : vector<256x128xf32> to vector<256x128xbf16>
    %c2 = arith.constant 2 : index
    %c0_27 = arith.constant 0 : index
    %c0_28 = arith.constant 0 : index
    %30 = vector.load %arg9[%c2, %c0_27, %c0_28] : memref<3x256x128xf32, #tpu.memory_space<vmem>>, vector<1x256x128xf32>
    %31 = vector.shape_cast %30 : vector<1x256x128xf32> to vector<256x128xf32>
    %c2_29 = arith.constant 2 : index
    %c0_30 = arith.constant 0 : index
    %c0_31 = arith.constant 0 : index
    %32 = vector.load %arg6[%c2_29, %c0_30, %c0_31] : memref<3x128x128xbf16, #tpu.memory_space<vmem>>, vector<1x128x128xbf16>
    %33 = vector.shape_cast %32 : vector<1x128x128xbf16> to vector<128x128xbf16>
    %cst_32 = arith.constant dense<0.000000e+00> : vector<256x128xf32>
    %34 = tpu.matmul %29, %33, %cst_32 {dimension_numbers = #tpu.dot_dimension_numbers<[1], [0], [0], [1], [0, 0, 1, 1], [], []>} : vector<256x128xbf16>, vector<128x128xbf16>, vector<256x128xf32> -> vector<256x128xf32>
    %35 = arith.addf %31, %34 : vector<256x128xf32>
    %c2_33 = arith.constant 2 : index
    %c0_34 = arith.constant 0 : index
    %c0_35 = arith.constant 0 : index
    %36 = vector.load %arg9[%c2_33, %c0_34, %c0_35] : memref<3x256x128xf32, #tpu.memory_space<vmem>>, vector<1x256x128xf32>
    %37 = vector.shape_cast %36 : vector<1x256x128xf32> to vector<256x128xf32>
    %38 = vector.shape_cast %35 : vector<256x128xf32> to vector<1x256x128xf32>
    tpu.vector_store %arg9[%c2_33, %c0_34, %c0_35], %38 {strides = array<i32>} : memref<3x256x128xf32, #tpu.memory_space<vmem>>, vector<1x256x128xf32>,
    %c0_i32_36 = arith.constant 0 : i32
    %39 = arith.cmpi eq, %arg2, %c0_i32_36 : i32
    %40 = arith.extui %39 : i1 to i32
    %c0_i32_37 = arith.constant 0 : i32
    %41 = arith.cmpi ne, %40, %c0_i32_37 : i32
    scf.if %41 {
      %c0_38 = arith.constant 0 : index
      %c0_39 = arith.constant 0 : index
      %42 = vector.load %arg7[%c0_38, %c0_39] : memref<3x128xf32, #tpu.memory_space<vmem>>, vector<3x128xf32>
      %c0_40 = arith.constant 0 : index
      %c0_41 = arith.constant 0 : index
      %c0_42 = arith.constant 0 : index
      %43 = vector.load %arg9[%c0_40, %c0_41, %c0_42] : memref<3x256x128xf32, #tpu.memory_space<vmem>>, vector<1x256x128xf32>
      %44 = vector.shape_cast %43 : vector<1x256x128xf32> to vector<256x128xf32>
      %45 = vector.extract_strided_slice %42 {offsets = [0, 0], sizes = [1, 128], strides = [1, 1]} : vector<3x128xf32> to vector<1x128xf32>
      %46 = vector.broadcast %45 : vector<1x128xf32> to vector<256x128xf32>
      %47 = arith.addf %44, %46 : vector<256x128xf32>
      %48 = arith.truncf %47 : vector<256x128xf32> to vector<256x128xbf16>
      %c0_43 = arith.constant 0 : index
      %c0_44 = arith.constant 0 : index
      %c0_45 = arith.constant 0 : index
      %c0_46 = arith.constant 0 : index
      %49 = vector.load %arg8[%c0_43, %c0_44, %c0_45, %c0_46] : memref<3x1x256x128xbf16, #tpu.memory_space<vmem>>, vector<1x1x256x128xbf16>
      %50 = vector.shape_cast %49 : vector<1x1x256x128xbf16> to vector<256x128xbf16>
      %51 = vector.shape_cast %48 : vector<256x128xbf16> to vector<1x1x256x128xbf16>
      tpu.vector_store %arg8[%c0_43, %c0_44, %c0_45, %c0_46], %51 {strides = array<i32>} : memref<3x1x256x128xbf16, #tpu.memory_space<vmem>>, vector<1x1x256x128xbf16>,
      %c1_47 = arith.constant 1 : index
      %c0_48 = arith.constant 0 : index
      %c0_49 = arith.constant 0 : index
      %52 = vector.load %arg9[%c1_47, %c0_48, %c0_49] : memref<3x256x128xf32, #tpu.memory_space<vmem>>, vector<1x256x128xf32>
      %53 = vector.shape_cast %52 : vector<1x256x128xf32> to vector<256x128xf32>
      %54 = vector.extract_strided_slice %42 {offsets = [1, 0], sizes = [1, 128], strides = [1, 1]} : vector<3x128xf32> to vector<1x128xf32>
      %55 = vector.broadcast %54 : vector<1x128xf32> to vector<256x128xf32>
      %56 = arith.addf %53, %55 : vector<256x128xf32>
      %57 = arith.truncf %56 : vector<256x128xf32> to vector<256x128xbf16>
      %c1_50 = arith.constant 1 : index
      %c0_51 = arith.constant 0 : index
      %c0_52 = arith.constant 0 : index
      %c0_53 = arith.constant 0 : index
      %58 = vector.load %arg8[%c1_50, %c0_51, %c0_52, %c0_53] : memref<3x1x256x128xbf16, #tpu.memory_space<vmem>>, vector<1x1x256x128xbf16>
      %59 = vector.shape_cast %58 : vector<1x1x256x128xbf16> to vector<256x128xbf16>
      %60 = vector.shape_cast %57 : vector<256x128xbf16> to vector<1x1x256x128xbf16>
      tpu.vector_store %arg8[%c1_50, %c0_51, %c0_52, %c0_53], %60 {strides = array<i32>} : memref<3x1x256x128xbf16, #tpu.memory_space<vmem>>, vector<1x1x256x128xbf16>,
      %c2_54 = arith.constant 2 : index
      %c0_55 = arith.constant 0 : index
      %c0_56 = arith.constant 0 : index
      %61 = vector.load %arg9[%c2_54, %c0_55, %c0_56] : memref<3x256x128xf32, #tpu.memory_space<vmem>>, vector<1x256x128xf32>
      %62 = vector.shape_cast %61 : vector<1x256x128xf32> to vector<256x128xf32>
      %63 = vector.extract_strided_slice %42 {offsets = [2, 0], sizes = [1, 128], strides = [1, 1]} : vector<3x128xf32> to vector<1x128xf32>
      %64 = vector.broadcast %63 : vector<1x128xf32> to vector<256x128xf32>
      %65 = arith.addf %62, %64 : vector<256x128xf32>
      %66 = arith.truncf %65 : vector<256x128xf32> to vector<256x128xbf16>
      %c2_57 = arith.constant 2 : index
      %c0_58 = arith.constant 0 : index
      %c0_59 = arith.constant 0 : index
      %c0_60 = arith.constant 0 : index
      %67 = vector.load %arg8[%c2_57, %c0_58, %c0_59, %c0_60] : memref<3x1x256x128xbf16, #tpu.memory_space<vmem>>, vector<1x1x256x128xbf16>
      %68 = vector.shape_cast %67 : vector<1x1x256x128xbf16> to vector<256x128xbf16>
      %69 = vector.shape_cast %66 : vector<256x128xbf16> to vector<1x1x256x128xbf16>
      tpu.vector_store %arg8[%c2_57, %c0_58, %c0_59, %c0_60], %69 {strides = array<i32>} : memref<3x1x256x128xbf16, #tpu.memory_space<vmem>>, vector<1x1x256x128xbf16>,
    } else {
    }
    return
  }
  func.func @transform_0(%arg0: i32, %arg1: i32, %arg2: i32) -> (i32, i32, i32) {
    %c0_i32 = arith.constant 0 : i32
    return %arg0, %arg1, %arg2 : i32, i32, i32
  }
  func.func @transform_1(%arg0: i32, %arg1: i32, %arg2: i32) -> (i32, i32, i32) {
    %c0_i32 = arith.constant 0 : i32
    return %arg0, %arg1, %arg2 : i32, i32, i32
  }
  func.func @transform_2(%arg0: i32, %arg1: i32, %arg2: i32) -> (i32, i32, i32) {
    %c0_i32 = arith.constant 0 : i32
    return %arg0, %arg1, %arg2 : i32, i32, i32
  }
  func.func @transform_3(%arg0: i32, %arg1: i32, %arg2: i32) -> (i32, i32, i32) {
    %c0_i32 = arith.constant 0 : i32
    %c0_i32_0 = arith.constant 0 : i32
    %c0_i32_1 = arith.constant 0 : i32
    return %c0_i32, %arg2, %c0_i32_0 : i32, i32, i32
  }
  func.func @transform_4(%arg0: i32, %arg1: i32, %arg2: i32) -> (i32, i32) {
    %c0_i32 = arith.constant 0 : i32
    %c0_i32_0 = arith.constant 0 : i32
    %c0_i32_1 = arith.constant 0 : i32
    return %c0_i32, %c0_i32_0 : i32, i32
  }
  func.func @transform_5(%arg0: i32, %arg1: i32, %arg2: i32) -> (i32, i32, i32, i32) {
    %c0_i32 = arith.constant 0 : i32
    %c0_i32_0 = arith.constant 0 : i32
    %c0_i32_1 = arith.constant 0 : i32
    return %c0_i32, %arg0, %arg1, %c0_i32_0 : i32, i32, i32, i32
  }
}

</mosaic_0001>

<llo_original>
// kernel: tpu_custom_call.1
$region0: #{tpu_custom_call.1}
  #allocation0 [shape = 'u32[]', space=smem, size = 0x4, offset = 0x4, fixed_abs, tag = 'smem constant byte address 0x4 - core index']
  #allocation1 [shape = 'u32[144,128]{1,0:T(1,128)}', space=vmem, size = 0x12000, scoped, tag = 'internal scratch']
  #allocation2 [shape = 'f32[3,256,128]{2,1,0:T(8,128)}', space=vmem, size = 0x60000, scoped, tag = 'scratch operand']
  #allocation12 [shape = 's32[]', space=sflag, size = 0x4, offset = 0, fixed_abs, tag = 'sflag constant byte address 0x0 - dummy sync flag']
  %s0 = inlined_call_operand.hbm [shape: f32[2,512,128], index: 0, kind: input, shape index: {}]
  %s1 = inlined_call_operand.hbm [shape: f32[2,512,128], index: 1, kind: input, shape index: {}]
  %s2 = inlined_call_operand.hbm [shape: f32[2,512,128], index: 2, kind: input, shape index: {}]
  %s3 = inlined_call_operand.hbm [shape: bf16[3,128,128], index: 3, kind: input, shape index: {}]
  %s4 = inlined_call_operand.vmem [shape: f32[3,128], index: 4, kind: input, shape index: {}]
  %s5 = inlined_call_operand.hbm [shape: bf16[3,2,512,128], index: 5, kind: output, shape index: {}]
  %s6 = sld [smem:[#allocation0]]
  $region77: #{tpu_custom_call.1} parent=0
    _
  %s8 = ssub.s32 1, %s6
  %s9 = scalar_select 0, %s8, %s6
  $region1: #{tpu_custom_call.1} parent=0
    #allocation3 [shape = 'u8[262144]{0}', space=vmem, size = 0x40000, scoped, tag = 'input window, operand 0']
    #allocation4 [shape = 's32[2]{0}', space=sflag, size = 0x8, scoped, tag = 'scoped memory for tpu_custom_call.1']
    #allocation5 [shape = 's32[2]{0}', space=sflag, size = 0x8, scoped, tag = 'scoped memory for tpu_custom_call.1']
    #allocation6 [shape = 'u8[262144]{0}', space=vmem, size = 0x40000, scoped, tag = 'input window, operand 1']
    #allocation7 [shape = 's32[2]{0}', space=sflag, size = 0x8, scoped, tag = 'scoped memory for tpu_custom_call.1']
    #allocation8 [shape = 'u8[262144]{0}', space=vmem, size = 0x40000, scoped, tag = 'input window, operand 2']
    #allocation9 [shape = 'u8[98304]{0}', space=vmem, size = 0x18000, scoped, tag = 'input window, operand 3, single buffered']
    #allocation10 [shape = 's32[1]{0}', space=sflag, size = 0x4, scoped, tag = 'scoped memory for tpu_custom_call.1']
    #allocation11 [shape = 'u8[393216]{0}', space=vmem, size = 0x60000, scoped, tag = 'output window, operand 0']
    %10 = vsyncpa [#allocation4], 0
    %s11 = scalar_lea.sflag [#allocation4], 1
    %12 = vsyncpa %s11, 0
    %13 = vsyncpa [#allocation7], 0
    %s14 = scalar_lea.sflag [#allocation7], 1
    %15 = vsyncpa %s14, 0
    %16 = vsyncpa [#allocation10], 0
    %17 = vsyncpa [#allocation5], 0
    %s18 = scalar_lea.sflag [#allocation5], 1
    %19 = vsyncpa %s18, 0
    loop: start=0, step=1, limit=6
    $region2: #{tpu_custom_call.1} parent=1 // loop_pre_header
      _
    $region3: #{tpu_custom_call.1} parent=1 // loop_header
      %s21 = sphi 0, %s25
      %p22 = scmp.ge.s32.totalorder %s21, 6
      %s28 = sphi 0, %s47
      %s29 = sphi 0, %s43
      %s30 = sphi 0, %s39
      %s31 = sphi 0, %s28
      %s32 = sphi 0, %s29
      %s33 = sphi 0, %s30
      %s34 = sphi 0, %s31
      %s35 = sphi 0, %s32
      %s36 = sphi 0, %s33
      %s54 = sphi 0, %s56
      %s57 = sphi 0, %s54
      %s58 = sphi 0, %s57
      %s74 = sphi 0, %s58
      %s84 = sphi 0, %s86
      %s87 = sphi 0, %s84
      %s88 = sphi 0, %s87
      %s104 = sphi 0, %s88
      %s114 = sphi 0, %s116
      %s117 = sphi 0, %s114
      %s118 = sphi 0, %s117
      %s134 = sphi 0, %s118
      %s140 = sphi 0, %s142
      %s143 = sphi 0, %s140
      %s144 = sphi 0, %s143
      %s160 = sphi 0, %s144
      %s164 = sphi 0, %s164
      %s166 = sphi 0, %s164
      %s167 = sphi 0, %s166
      %s181 = sphi 0, %s167
      %s189 = sphi 0, %s191
      %s192 = sphi 0, %s189
      %s193 = sphi 0, %s192
      %s209 = sphi 0, %s193
    $region4: #{tpu_custom_call.1} parent=1 // loop_header_branch
      %24 = sbr.rel (%p22) target = $region8
    $region5: #{tpu_custom_call.1} parent=1 // loop_body
      %s26 = ssub.s32 %s21, 1
      %s27 = ssub.s32 %s21, 2
      %s37 = sadd.s32 1, %s30
      %p38 = scmp.ge.s32.totalorder %s37, 1
      %s39 = scalar_select %p38, 0, %s37
      %s40 = sadd.s32 1, %s29
      %s41 = scalar_select %p38, %s40, %s29
      %p42 = scmp.ge.s32.totalorder %s41, 2
      %s43 = scalar_select %p42, 0, %s41
      %s44 = sadd.s32 1, %s28
      %s45 = scalar_select %p42, %s44, %s28
      %p46 = scmp.ge.s32.totalorder %s45, 2
      %s47 = scalar_select %p46, 0, %s45
      %s48 = ssub.s32 %s28, %s47
      %s49 = ssub.s32 %s29, %s43
      %s50 = sor.u32 %s48, %s49
      %s51 = ssub.s32 %s30, %s39
      %s52 = sor.u32 %s50, %s51
      %p53 = scmp.eq.s32.totalorder %s52, 0
      %s55 = sadd.s32 %s54, 1
      %s56 = scalar_select %p53, %s54, %s55
      %p59 = pneg %p53
      %p60 = scmp.eq.s32.totalorder %s21, 3
      %p61 = por %p59, %p60
      %p62 = scmp.ne.s32.totalorder %s54, %s57
      %p63 = scmp.eq.s32.totalorder %s21, 0
      %p64 = por %p62, %p63
      %p65 = scmp.ne.s32.totalorder %s54, %s57
      %p66 = scmp.eq.s32.totalorder %s26, 3
      %p67 = por %p65, %p66
      %p68 = scmp.ne.s32.totalorder %s57, %s58
      %p69 = scmp.eq.s32.totalorder %s26, 0
      %p70 = por %p68, %p69
      %p71 = scmp.ne.s32.totalorder %s57, %s58
      %p72 = scmp.eq.s32.totalorder %s27, 3
      %p73 = por %p71, %p72
      %p75 = scmp.ne.s32.totalorder %s58, %s74
      %p76 = scmp.eq.s32.totalorder %s27, 0
      %p77 = por %p75, %p76
      %s78 = ssub.s32 %s28, %s47
      %s79 = ssub.s32 %s29, %s43
      %s80 = sor.u32 %s78, %s79
      %s81 = ssub.s32 %s30, %s39
      %s82 = sor.u32 %s80, %s81
      %p83 = scmp.eq.s32.totalorder %s82, 0
      %s85 = sadd.s32 %s84, 1
      %s86 = scalar_select %p83, %s84, %s85
      %p89 = pneg %p83
      %p90 = scmp.eq.s32.totalorder %s21, 3
      %p91 = por %p89, %p90
      %p92 = scmp.ne.s32.totalorder %s84, %s87
      %p93 = scmp.eq.s32.totalorder %s21, 0
      %p94 = por %p92, %p93
      %p95 = scmp.ne.s32.totalorder %s84, %s87
      %p96 = scmp.eq.s32.totalorder %s26, 3
      %p97 = por %p95, %p96
      %p98 = scmp.ne.s32.totalorder %s87, %s88
      %p99 = scmp.eq.s32.totalorder %s26, 0
      %p100 = por %p98, %p99
      %p101 = scmp.ne.s32.totalorder %s87, %s88
      %p102 = scmp.eq.s32.totalorder %s27, 3
      %p103 = por %p101, %p102
      %p105 = scmp.ne.s32.totalorder %s88, %s104
      %p106 = scmp.eq.s32.totalorder %s27, 0
      %p107 = por %p105, %p106
      %s108 = ssub.s32 %s28, %s47
      %s109 = ssub.s32 %s29, %s43
      %s110 = sor.u32 %s108, %s109
      %s111 = ssub.s32 %s30, %s39
      %s112 = sor.u32 %s110, %s111
      %p113 = scmp.eq.s32.totalorder %s112, 0
      %s115 = sadd.s32 %s114, 1
      %s116 = scalar_select %p113, %s114, %s115
      %p119 = pneg %p113
      %p120 = scmp.eq.s32.totalorder %s21, 3
      %p121 = por %p119, %p120
      %p122 = scmp.ne.s32.totalorder %s114, %s117
      %p123 = scmp.eq.s32.totalorder %s21, 0
      %p124 = por %p122, %p123
      %p125 = scmp.ne.s32.totalorder %s114, %s117
      %p126 = scmp.eq.s32.totalorder %s26, 3
      %p127 = por %p125, %p126
      %p128 = scmp.ne.s32.totalorder %s117, %s118
      %p129 = scmp.eq.s32.totalorder %s26, 0
      %p130 = por %p128, %p129
      %p131 = scmp.ne.s32.totalorder %s117, %s118
      %p132 = scmp.eq.s32.totalorder %s27, 3
      %p133 = por %p131, %p132
      %p135 = scmp.ne.s32.totalorder %s118, %s134
      %p136 = scmp.eq.s32.totalorder %s27, 0
      %p137 = por %p135, %p136
      %s138 = ssub.s32 %s30, %s39
      %p139 = scmp.eq.s32.totalorder %s138, 0
      %s141 = sadd.s32 %s140, 1
      %s142 = scalar_select %p139, %s140, %s141
      %p145 = pneg %p139
      %p146 = scmp.eq.s32.totalorder %s21, 3
      %p147 = por %p145, %p146
      %p148 = scmp.ne.s32.totalorder %s140, %s143
      %p149 = scmp.eq.s32.totalorder %s21, 0
      %p150 = por %p148, %p149
      %p151 = scmp.ne.s32.totalorder %s140, %s143
      %p152 = scmp.eq.s32.totalorder %s26, 3
      %p153 = por %p151, %p152
      %p154 = scmp.ne.s32.totalorder %s143, %s144
      %p155 = scmp.eq.s32.totalorder %s26, 0
      %p156 = por %p154, %p155
      %p157 = scmp.ne.s32.totalorder %s143, %s144
      %p158 = scmp.eq.s32.totalorder %s27, 3
      %p159 = por %p157, %p158
      %p161 = scmp.ne.s32.totalorder %s144, %s160
      %p162 = scmp.eq.s32.totalorder %s27, 0
      %p163 = por %p161, %p162
      %s165 = sadd.s32 %s164, 1
      %p168 = scmp.eq.s32.totalorder %s21, 3
      %p169 = scmp.ne.s32.totalorder %s164, %s166
      %p170 = scmp.eq.s32.totalorder %s21, 0
      %p171 = por %p169, %p170
      %p172 = scmp.ne.s32.totalorder %s164, %s166
      %p173 = scmp.eq.s32.totalorder %s26, 3
      %p174 = por %p172, %p173
      %p175 = scmp.ne.s32.totalorder %s166, %s167
      %p176 = scmp.eq.s32.totalorder %s26, 0
      %p177 = por %p175, %p176
      %p178 = scmp.ne.s32.totalorder %s166, %s167
      %p179 = scmp.eq.s32.totalorder %s27, 3
      %p180 = por %p178, %p179
      %p182 = scmp.ne.s32.totalorder %s167, %s181
      %p183 = scmp.eq.s32.totalorder %s27, 0
      %p184 = por %p182, %p183
      %s185 = ssub.s32 %s28, %s47
      %s186 = ssub.s32 %s29, %s43
      %s187 = sor.u32 %s185, %s186
      %p188 = scmp.eq.s32.totalorder %s187, 0
      %s190 = sadd.s32 %s189, 1
      %s191 = scalar_select %p188, %s189, %s190
      %p194 = pneg %p188
      %p195 = scmp.eq.s32.totalorder %s21, 3
      %p196 = por %p194, %p195
      %p197 = scmp.ne.s32.totalorder %s189, %s192
      %p198 = scmp.eq.s32.totalorder %s21, 0
      %p199 = por %p197, %p198
      %p200 = scmp.ne.s32.totalorder %s189, %s192
      %p201 = scmp.eq.s32.totalorder %s26, 3
      %p202 = por %p200, %p201
      %p203 = scmp.ne.s32.totalorder %s192, %s193
      %p204 = scmp.eq.s32.totalorder %s26, 0
      %p205 = por %p203, %p204
      %p206 = scmp.ne.s32.totalorder %s192, %s193
      %p207 = scmp.eq.s32.totalorder %s27, 3
      %p208 = por %p206, %p207
      %p210 = scmp.ne.s32.totalorder %s193, %s209
      %p211 = scmp.eq.s32.totalorder %s27, 0
      %p212 = por %p210, %p211
      %p213 = scmp.le.s32.totalorder 1, %s21
      %p214 = scmp.lt.s32.totalorder %s21, 5
      %p215 = pnand %p213, %p214
      %p216 = pneg %p215
      // Predicated region
      $region9: #{tpu_custom_call.1} parent=5 // pred_check
        _
      $region10: #{tpu_custom_call.1} parent=5 // pred_check_branch
        %218 = sbr.rel (%p215) target = $region12
      $region11: #{tpu_custom_call.1} parent=5 // pred_region
        %s219 = ssub.s32 %s21, 1
        // Predicated region
        $region13: #{tpu_custom_call.1} parent=11 // pred_check
          %p220 = pneg %p156
        $region14: #{tpu_custom_call.1} parent=11 // pred_check_branch
          %222 = sbr.rel (%p220) target = $region16
        $region15: #{tpu_custom_call.1} parent=11 // pred_region
          %s223 = smul.u32 16, %s33
          %s225 = ssub.s32 3072, 3072
          %226 = vsyncadd [#allocation10], %s225
          %s227 = smul.addr %s223, 64
          %s228 = scalar_lea.hbm %s3, %s227
          %s229 = sshll.u32 [#allocation9], 4
          %s230 = int_to_ptr.vmem [resolvable:$true] %s229
          %235 = dma.hbm_to_vmem [thread:$0]  %s228, 3072, %s230, [#allocation10], 64, 64, 4
        $region16: #{tpu_custom_call.1} parent=11 // pred_fallthru
          _
        // Predicated region
        $region17: #{tpu_custom_call.1} parent=11 // pred_check
          %p236 = pneg %p177
        $region18: #{tpu_custom_call.1} parent=11 // pred_check_branch
          %238 = sbr.rel (%p236) target = $region20
        $region19: #{tpu_custom_call.1} parent=11 // pred_region
          _
        $region20: #{tpu_custom_call.1} parent=11 // pred_fallthru
          _
      $region12: #{tpu_custom_call.1} parent=5 // pred_fallthru
        _
      %p239 = scmp.lt.s32.totalorder %s21, 4
      // Predicated region
      $region21: #{tpu_custom_call.1} parent=5 // pred_check
        %p240 = pneg %p239
      $region22: #{tpu_custom_call.1} parent=5 // pred_check_branch
        %242 = sbr.rel (%p240) target = $region24
      $region23: #{tpu_custom_call.1} parent=5 // pred_region
        // Predicated region
        $region25: #{tpu_custom_call.1} parent=23 // pred_check
          %p243 = pneg %p64
        $region26: #{tpu_custom_call.1} parent=23 // pred_check_branch
          %245 = sbr.rel (%p243) target = $region28
        $region27: #{tpu_custom_call.1} parent=23 // pred_region
          %s246 = sand.u32 %s54, 1
          %s247 = scalar_lea.sflag [#allocation4], %s246
          %s248 = sand.u32 %s54, 1
          %s249 = smul.addr %s248, 256
          %s250 = scalar_lea.vmem [#allocation3], %s249
          %s251 = smul.u32 32, %s29
          %s253 = ssub.s32 4096, 4096
          %254 = vsyncadd %s247, %s253
          %s255 = sadd.s32 %s30, %s251
          %s256 = smul.addr %s28, 64
          %s257 = sadd.s32 %s255, %s256
          %s258 = smul.addr %s257, 128
          %s259 = scalar_lea.hbm %s0, %s258
          %s260 = sshll.u32 %s250, 4
          %s261 = int_to_ptr.vmem [resolvable:$true] %s260
          %266 = dma.hbm_to_vmem [thread:$0]  %s259, 4096, %s261, %s247, 128, 128, 8
        $region28: #{tpu_custom_call.1} parent=23 // pred_fallthru
          _
        // Predicated region
        $region29: #{tpu_custom_call.1} parent=23 // pred_check
          %p267 = pneg %p94
        $region30: #{tpu_custom_call.1} parent=23 // pred_check_branch
          %269 = sbr.rel (%p267) target = $region32
        $region31: #{tpu_custom_call.1} parent=23 // pred_region
          %s270 = sand.u32 %s21, 1
          %s271 = scalar_lea.sflag [#allocation7], %s270
          %s272 = sand.u32 %s84, 1
          %s273 = smul.addr %s272, 256
          %s274 = scalar_lea.vmem [#allocation6], %s273
          %s275 = smul.u32 32, %s29
          %s277 = ssub.s32 4096, 4096
          %278 = vsyncadd %s271, %s277
          %s279 = sadd.s32 %s30, %s275
          %s280 = smul.addr %s28, 64
          %s281 = sadd.s32 %s279, %s280
          %s282 = smul.addr %s281, 128
          %s283 = scalar_lea.hbm %s1, %s282
          %s284 = sshll.u32 %s274, 4
          %s285 = int_to_ptr.vmem [resolvable:$true] %s284
          %290 = dma.hbm_to_vmem [thread:$0]  %s283, 4096, %s285, %s271, 128, 128, 8
        $region32: #{tpu_custom_call.1} parent=23 // pred_fallthru
          _
        // Predicated region
        $region33: #{tpu_custom_call.1} parent=23 // pred_check
          %p291 = pneg %p124
        $region34: #{tpu_custom_call.1} parent=23 // pred_check_branch
          %293 = sbr.rel (%p291) target = $region36
        $region35: #{tpu_custom_call.1} parent=23 // pred_region
          %s294 = sand.u32 %s21, 1
          %s295 = scalar_lea.sflag [#allocation7], %s294
          %s296 = sand.u32 %s114, 1
          %s297 = smul.addr %s296, 256
          %s298 = scalar_lea.vmem [#allocation8], %s297
          %s299 = smul.u32 32, %s29
          %s301 = ssub.s32 4096, 4096
          %302 = vsyncadd %s295, %s301
          %s303 = sadd.s32 %s30, %s299
          %s304 = smul.addr %s28, 64
          %s305 = sadd.s32 %s303, %s304
          %s306 = smul.addr %s305, 128
          %s307 = scalar_lea.hbm %s2, %s306
          %s308 = sshll.u32 %s298, 4
          %s309 = int_to_ptr.vmem [resolvable:$true] %s308
          %314 = dma.hbm_to_vmem [thread:$0]  %s307, 4096, %s309, %s295, 128, 128, 8
        $region36: #{tpu_custom_call.1} parent=23 // pred_fallthru
          _
      $region24: #{tpu_custom_call.1} parent=5 // pred_fallthru
        _
      %p315 = scmp.le.s32.totalorder 1, %s21
      %p316 = scmp.lt.s32.totalorder %s21, 5
      %p317 = pnand %p315, %p316
      %p318 = pneg %p317
      // Predicated region
      $region37: #{tpu_custom_call.1} parent=5 // pred_check
        _
      $region38: #{tpu_custom_call.1} parent=5 // pred_check_branch
        %320 = sbr.rel (%p317) target = $region40
      $region39: #{tpu_custom_call.1} parent=5 // pred_region
        %s321 = ssub.s32 %s21, 1
        %s322 = sand.u32 %s57, 1
        %s323 = scalar_lea.sflag [#allocation4], %s322
        %s324 = sand.u32 %s57, 1
        %s325 = smul.addr %s324, 256
        %s326 = scalar_lea.vmem [#allocation3], %s325
        // Predicated region
        $region41: #{tpu_custom_call.1} parent=39 // pred_check
          %p327 = pneg %p70
        $region42: #{tpu_custom_call.1} parent=39 // pred_check_branch
          %329 = sbr.rel (%p327) target = $region44
        $region43: #{tpu_custom_call.1} parent=39 // pred_region
          %330 = dma.done %s323, 4096
        $region44: #{tpu_custom_call.1} parent=39 // pred_fallthru
          _
        %s331 = sand.u32 %s26, 1
        %s332 = scalar_lea.sflag [#allocation7], %s331
        %s333 = sand.u32 %s87, 1
        %s334 = smul.addr %s333, 256
        %s335 = scalar_lea.vmem [#allocation6], %s334
        // Predicated region
        $region45: #{tpu_custom_call.1} parent=39 // pred_check
          %p336 = pneg %p100
        $region46: #{tpu_custom_call.1} parent=39 // pred_check_branch
          %338 = sbr.rel (%p336) target = $region48
        $region47: #{tpu_custom_call.1} parent=39 // pred_region
          %339 = dma.done %s332, 4096
        $region48: #{tpu_custom_call.1} parent=39 // pred_fallthru
          _
        %s340 = sand.u32 %s26, 1
        %s341 = scalar_lea.sflag [#allocation7], %s340
        %s342 = sand.u32 %s117, 1
        %s343 = smul.addr %s342, 256
        %s344 = scalar_lea.vmem [#allocation8], %s343
        // Predicated region
        $region49: #{tpu_custom_call.1} parent=39 // pred_check
          %p345 = pneg %p130
        $region50: #{tpu_custom_call.1} parent=39 // pred_check_branch
          %347 = sbr.rel (%p345) target = $region52
        $region51: #{tpu_custom_call.1} parent=39 // pred_region
          %348 = dma.done %s341, 4096
        $region52: #{tpu_custom_call.1} parent=39 // pred_fallthru
          _
        // Predicated region
        $region53: #{tpu_custom_call.1} parent=39 // pred_check
          %p349 = pneg %p156
        $region54: #{tpu_custom_call.1} parent=39 // pred_check_branch
          %351 = sbr.rel (%p349) target = $region56
        $region55: #{tpu_custom_call.1} parent=39 // pred_region
          %352 = dma.done [#allocation10], 3072
        $region56: #{tpu_custom_call.1} parent=39 // pred_fallthru
          _
        %s353 = sand.u32 %s57, 1
        %s354 = scalar_lea.sflag [#allocation4], %s353
        %s355 = sand.u32 %s57, 1
        %s356 = smul.addr %s355, 256
        %s357 = scalar_lea.vmem [#allocation3], %s356
        %p358 = pneg %p70
        %p359 = pneg %p67
        %s360 = sand.u32 %s26, 1
        %s361 = scalar_lea.sflag [#allocation7], %s360
        %s362 = sand.u32 %s87, 1
        %s363 = smul.addr %s362, 256
        %s364 = scalar_lea.vmem [#allocation6], %s363
        %p365 = pneg %p100
        %p366 = pneg %p97
        %s367 = sand.u32 %s26, 1
        %s368 = scalar_lea.sflag [#allocation7], %s367
        %s369 = sand.u32 %s117, 1
        %s370 = smul.addr %s369, 256
        %s371 = scalar_lea.vmem [#allocation8], %s370
        %p372 = pneg %p130
        %p373 = pneg %p127
        %p374 = pneg %p156
        %p375 = pneg %p153
        %p376 = pneg %p177
        %p377 = pneg %p174
        %p378 = pneg %p205
        %p379 = pneg %p202
        %s380 = sand.u32 %s192, 1
        %s381 = scalar_lea.sflag [#allocation5], %s380
        %s382 = sand.u32 %s192, 1
        %s383 = smul.addr %s382, 384
        %s384 = scalar_lea.vmem [#allocation11], %s383
        %s385 = smul.u32 32, %s32
        %s386 = smul.u32 32, %s32
        %s387 = smul.u32 32, %s32
        %s388 = smul.u32 16, %s33
        %s389 = smul.u32 32, %s32
        %p391 = scmp.eq.s32.totalorder %s33, 0
        // Predicated region
        $region57: #{tpu_custom_call.1} parent=39 // pred_check
          %p392 = pneg %p391
        $region58: #{tpu_custom_call.1} parent=39 // pred_check_branch
          %394 = sbr.rel (%p392) target = $region60
        $region59: #{tpu_custom_call.1} parent=39 // pred_region
          %395 = vst [vmem:[#allocation2] sm:$0xff] 0.0
          %396 = vst [vmem:[#allocation2 + $0x8] sm:$0xff] 0.0
          %397 = vst [vmem:[#allocation2 + $0x10] sm:$0xff] 0.0
          %398 = vst [vmem:[#allocation2 + $0x18] sm:$0xff] 0.0
          %399 = vst [vmem:[#allocation2 + $0x20] sm:$0xff] 0.0
          %400 = vst [vmem:[#allocation2 + $0x28] sm:$0xff] 0.0
          %401 = vst [vmem:[#allocation2 + $0x30] sm:$0xff] 0.0
          %402 = vst [vmem:[#allocation2 + $0x38] sm:$0xff] 0.0
          %403 = vst [vmem:[#allocation2 + $0x40] sm:$0xff] 0.0
          %404 = vst [vmem:[#allocation2 + $0x48] sm:$0xff] 0.0
          %405 = vst [vmem:[#allocation2 + $0x50] sm:$0xff] 0.0
          %406 = vst [vmem:[#allocation2 + $0x58] sm:$0xff] 0.0
          %407 = vst [vmem:[#allocation2 + $0x60] sm:$0xff] 0.0
          %408 = vst [vmem:[#allocation2 + $0x68] sm:$0xff] 0.0
          %409 = vst [vmem:[#allocation2 + $0x70] sm:$0xff] 0.0
          %410 = vst [vmem:[#allocation2 + $0x78] sm:$0xff] 0.0
          %411 = vst [vmem:[#allocation2 + $0x80] sm:$0xff] 0.0
          %412 = vst [vmem:[#allocation2 + $0x88] sm:$0xff] 0.0
          %413 = vst [vmem:[#allocation2 + $0x90] sm:$0xff] 0.0
          %414 = vst [vmem:[#allocation2 + $0x98] sm:$0xff] 0.0
          %415 = vst [vmem:[#allocation2 + $0xa0] sm:$0xff] 0.0
          %416 = vst [vmem:[#allocation2 + $0xa8] sm:$0xff] 0.0
          %417 = vst [vmem:[#allocation2 + $0xb0] sm:$0xff] 0.0
          %418 = vst [vmem:[#allocation2 + $0xb8] sm:$0xff] 0.0
          %419 = vst [vmem:[#allocation2 + $0xc0] sm:$0xff] 0.0
          %420 = vst [vmem:[#allocation2 + $0xc8] sm:$0xff] 0.0
          %421 = vst [vmem:[#allocation2 + $0xd0] sm:$0xff] 0.0
          %422 = vst [vmem:[#allocation2 + $0xd8] sm:$0xff] 0.0
          %423 = vst [vmem:[#allocation2 + $0xe0] sm:$0xff] 0.0
          %424 = vst [vmem:[#allocation2 + $0xe8] sm:$0xff] 0.0
          %425 = vst [vmem:[#allocation2 + $0xf0] sm:$0xff] 0.0
          %426 = vst [vmem:[#allocation2 + $0xf8] sm:$0xff] 0.0
          %427 = vst [vmem:[#allocation2 + $0x100] sm:$0xff] 0.0
          %428 = vst [vmem:[#allocation2 + $0x108] sm:$0xff] 0.0
          %429 = vst [vmem:[#allocation2 + $0x110] sm:$0xff] 0.0
          %430 = vst [vmem:[#allocation2 + $0x118] sm:$0xff] 0.0
          %431 = vst [vmem:[#allocation2 + $0x120] sm:$0xff] 0.0
          %432 = vst [vmem:[#allocation2 + $0x128] sm:$0xff] 0.0
          %433 = vst [vmem:[#allocation2 + $0x130] sm:$0xff] 0.0
          %434 = vst [vmem:[#allocation2 + $0x138] sm:$0xff] 0.0
          %435 = vst [vmem:[#allocation2 + $0x140] sm:$0xff] 0.0
          %436 = vst [vmem:[#allocation2 + $0x148] sm:$0xff] 0.0
          %437 = vst [vmem:[#allocation2 + $0x150] sm:$0xff] 0.0
          %438 = vst [vmem:[#allocation2 + $0x158] sm:$0xff] 0.0
          %439 = vst [vmem:[#allocation2 + $0x160] sm:$0xff] 0.0
          %440 = vst [vmem:[#allocation2 + $0x168] sm:$0xff] 0.0
          %441 = vst [vmem:[#allocation2 + $0x170] sm:$0xff] 0.0
          %442 = vst [vmem:[#allocation2 + $0x178] sm:$0xff] 0.0
          %443 = vst [vmem:[#allocation2 + $0x180] sm:$0xff] 0.0
          %444 = vst [vmem:[#allocation2 + $0x188] sm:$0xff] 0.0
          %445 = vst [vmem:[#allocation2 + $0x190] sm:$0xff] 0.0
          %446 = vst [vmem:[#allocation2 + $0x198] sm:$0xff] 0.0
          %447 = vst [vmem:[#allocation2 + $0x1a0] sm:$0xff] 0.0
          %448 = vst [vmem:[#allocation2 + $0x1a8] sm:$0xff] 0.0
          %449 = vst [vmem:[#allocation2 + $0x1b0] sm:$0xff] 0.0
          %450 = vst [vmem:[#allocation2 + $0x1b8] sm:$0xff] 0.0
          %451 = vst [vmem:[#allocation2 + $0x1c0] sm:$0xff] 0.0
          %452 = vst [vmem:[#allocation2 + $0x1c8] sm:$0xff] 0.0
          %453 = vst [vmem:[#allocation2 + $0x1d0] sm:$0xff] 0.0
          %454 = vst [vmem:[#allocation2 + $0x1d8] sm:$0xff] 0.0
          %455 = vst [vmem:[#allocation2 + $0x1e0] sm:$0xff] 0.0
          %456 = vst [vmem:[#allocation2 + $0x1e8] sm:$0xff] 0.0
          %457 = vst [vmem:[#allocation2 + $0x1f0] sm:$0xff] 0.0
          %458 = vst [vmem:[#allocation2 + $0x1f8] sm:$0xff] 0.0
          %459 = vst [vmem:[#allocation2 + $0x200] sm:$0xff] 0.0
          %460 = vst [vmem:[#allocation2 + $0x208] sm:$0xff] 0.0
          %461 = vst [vmem:[#allocation2 + $0x210] sm:$0xff] 0.0
          %462 = vst [vmem:[#allocation2 + $0x218] sm:$0xff] 0.0
          %463 = vst [vmem:[#allocation2 + $0x220] sm:$0xff] 0.0
          %464 = vst [vmem:[#allocation2 + $0x228] sm:$0xff] 0.0
          %465 = vst [vmem:[#allocation2 + $0x230] sm:$0xff] 0.0
          %466 = vst [vmem:[#allocation2 + $0x238] sm:$0xff] 0.0
          %467 = vst [vmem:[#allocation2 + $0x240] sm:$0xff] 0.0
          %468 = vst [vmem:[#allocation2 + $0x248] sm:$0xff] 0.0
          %469 = vst [vmem:[#allocation2 + $0x250] sm:$0xff] 0.0
          %470 = vst [vmem:[#allocation2 + $0x258] sm:$0xff] 0.0
          %471 = vst [vmem:[#allocation2 + $0x260] sm:$0xff] 0.0
          %472 = vst [vmem:[#allocation2 + $0x268] sm:$0xff] 0.0
          %473 = vst [vmem:[#allocation2 + $0x270] sm:$0xff] 0.0
          %474 = vst [vmem:[#allocation2 + $0x278] sm:$0xff] 0.0
          %475 = vst [vmem:[#allocation2 + $0x280] sm:$0xff] 0.0
          %476 = vst [vmem:[#allocation2 + $0x288] sm:$0xff] 0.0
          %477 = vst [vmem:[#allocation2 + $0x290] sm:$0xff] 0.0
          %478 = vst [vmem:[#allocation2 + $0x298] sm:$0xff] 0.0
          %479 = vst [vmem:[#allocation2 + $0x2a0] sm:$0xff] 0.0
          %480 = vst [vmem:[#allocation2 + $0x2a8] sm:$0xff] 0.0
          %481 = vst [vmem:[#allocation2 + $0x2b0] sm:$0xff] 0.0
          %482 = vst [vmem:[#allocation2 + $0x2b8] sm:$0xff] 0.0
          %483 = vst [vmem:[#allocation2 + $0x2c0] sm:$0xff] 0.0
          %484 = vst [vmem:[#allocation2 + $0x2c8] sm:$0xff] 0.0
          %485 = vst [vmem:[#allocation2 + $0x2d0] sm:$0xff] 0.0
          %486 = vst [vmem:[#allocation2 + $0x2d8] sm:$0xff] 0.0
          %487 = vst [vmem:[#allocation2 + $0x2e0] sm:$0xff] 0.0
          %488 = vst [vmem:[#allocation2 + $0x2e8] sm:$0xff] 0.0
          %489 = vst [vmem:[#allocation2 + $0x2f0] sm:$0xff] 0.0
          %490 = vst [vmem:[#allocation2 + $0x2f8] sm:$0xff] 0.0
        $region60: #{tpu_custom_call.1} parent=39 // pred_fallthru
          _
        %v491 = vld [vmem:[%s326] sm:$0xff]
        %v492 = vld [vmem:[%s326 + $0x8] sm:$0xff]
        %v493 = vld [vmem:[%s326 + $0x10] sm:$0xff]
        %v494 = vld [vmem:[%s326 + $0x18] sm:$0xff]
        %v495 = vld [vmem:[%s326 + $0x20] sm:$0xff]
        %v496 = vld [vmem:[%s326 + $0x28] sm:$0xff]
        %v497 = vld [vmem:[%s326 + $0x30] sm:$0xff]
        %v498 = vld [vmem:[%s326 + $0x38] sm:$0xff]
        %v499 = vld [vmem:[%s326 + $0x40] sm:$0xff]
        %v500 = vld [vmem:[%s326 + $0x48] sm:$0xff]
        %v501 = vld [vmem:[%s326 + $0x50] sm:$0xff]
        %v502 = vld [vmem:[%s326 + $0x58] sm:$0xff]
        %v503 = vld [vmem:[%s326 + $0x60] sm:$0xff]
        %v504 = vld [vmem:[%s326 + $0x68] sm:$0xff]
        %v505 = vld [vmem:[%s326 + $0x70] sm:$0xff]
        %v506 = vld [vmem:[%s326 + $0x78] sm:$0xff]
        %v507 = vld [vmem:[%s326 + $0x80] sm:$0xff]
        %v508 = vld [vmem:[%s326 + $0x88] sm:$0xff]
        %v509 = vld [vmem:[%s326 + $0x90] sm:$0xff]
        %v510 = vld [vmem:[%s326 + $0x98] sm:$0xff]
        %v511 = vld [vmem:[%s326 + $0xa0] sm:$0xff]
        %v512 = vld [vmem:[%s326 + $0xa8] sm:$0xff]
        %v513 = vld [vmem:[%s326 + $0xb0] sm:$0xff]
        %v514 = vld [vmem:[%s326 + $0xb8] sm:$0xff]
        %v515 = vld [vmem:[%s326 + $0xc0] sm:$0xff]
        %v516 = vld [vmem:[%s326 + $0xc8] sm:$0xff]
        %v517 = vld [vmem:[%s326 + $0xd0] sm:$0xff]
        %v518 = vld [vmem:[%s326 + $0xd8] sm:$0xff]
        %v519 = vld [vmem:[%s326 + $0xe0] sm:$0xff]
        %v520 = vld [vmem:[%s326 + $0xe8] sm:$0xff]
        %v521 = vld [vmem:[%s326 + $0xf0] sm:$0xff]
        %v522 = vld [vmem:[%s326 + $0xf8] sm:$0xff]
        %v523 = vpack.c.bf16 %v492, %v491
        %v524 = vpack.c.bf16 %v494, %v493
        %v525 = vpack.c.bf16 %v496, %v495
        %v526 = vpack.c.bf16 %v498, %v497
        %v527 = vpack.c.bf16 %v500, %v499
        %v528 = vpack.c.bf16 %v502, %v501
        %v529 = vpack.c.bf16 %v504, %v503
        %v530 = vpack.c.bf16 %v506, %v505
        %v531 = vpack.c.bf16 %v508, %v507
        %v532 = vpack.c.bf16 %v510, %v509
        %v533 = vpack.c.bf16 %v512, %v511
        %v534 = vpack.c.bf16 %v514, %v513
        %v535 = vpack.c.bf16 %v516, %v515
        %v536 = vpack.c.bf16 %v518, %v517
        %v537 = vpack.c.bf16 %v520, %v519
        %v538 = vpack.c.bf16 %v522, %v521
        %v539 = vld [vmem:[#allocation2] sm:$0xff]
        %v540 = vld [vmem:[#allocation2 + $0x8] sm:$0xff]
        %v541 = vld [vmem:[#allocation2 + $0x10] sm:$0xff]
        %v542 = vld [vmem:[#allocation2 + $0x18] sm:$0xff]
        %v543 = vld [vmem:[#allocation2 + $0x20] sm:$0xff]
        %v544 = vld [vmem:[#allocation2 + $0x28] sm:$0xff]
        %v545 = vld [vmem:[#allocation2 + $0x30] sm:$0xff]
        %v546 = vld [vmem:[#allocation2 + $0x38] sm:$0xff]
        %v547 = vld [vmem:[#allocation2 + $0x40] sm:$0xff]
        %v548 = vld [vmem:[#allocation2 + $0x48] sm:$0xff]
        %v549 = vld [vmem:[#allocation2 + $0x50] sm:$0xff]
        %v550 = vld [vmem:[#allocation2 + $0x58] sm:$0xff]
        %v551 = vld [vmem:[#allocation2 + $0x60] sm:$0xff]
        %v552 = vld [vmem:[#allocation2 + $0x68] sm:$0xff]
        %v553 = vld [vmem:[#allocation2 + $0x70] sm:$0xff]
        %v554 = vld [vmem:[#allocation2 + $0x78] sm:$0xff]
        %v555 = vld [vmem:[#allocation2 + $0x80] sm:$0xff]
        %v556 = vld [vmem:[#allocation2 + $0x88] sm:$0xff]
        %v557 = vld [vmem:[#allocation2 + $0x90] sm:$0xff]
        %v558 = vld [vmem:[#allocation2 + $0x98] sm:$0xff]
        %v559 = vld [vmem:[#allocation2 + $0xa0] sm:$0xff]
        %v560 = vld [vmem:[#allocation2 + $0xa8] sm:$0xff]
        %v561 = vld [vmem:[#allocation2 + $0xb0] sm:$0xff]
        %v562 = vld [vmem:[#allocation2 + $0xb8] sm:$0xff]
        %v563 = vld [vmem:[#allocation2 + $0xc0] sm:$0xff]
        %v564 = vld [vmem:[#allocation2 + $0xc8] sm:$0xff]
        %v565 = vld [vmem:[#allocation2 + $0xd0] sm:$0xff]
        %v566 = vld [vmem:[#allocation2 + $0xd8] sm:$0xff]
        %v567 = vld [vmem:[#allocation2 + $0xe0] sm:$0xff]
        %v568 = vld [vmem:[#allocation2 + $0xe8] sm:$0xff]
        %v569 = vld [vmem:[#allocation2 + $0xf0] sm:$0xff]
        %v570 = vld [vmem:[#allocation2 + $0xf8] sm:$0xff]
        %v571 = vld [vmem:[#allocation9] sm:$0xf]
        %v572 = vld [vmem:[#allocation9 + $0x4] sm:$0xf]
        %v573 = vld [vmem:[#allocation9 + $0x8] sm:$0xf]
        %v574 = vld [vmem:[#allocation9 + $0xc] sm:$0xf]
        %v575 = vld [vmem:[#allocation9 + $0x10] sm:$0xf]
        %v576 = vld [vmem:[#allocation9 + $0x14] sm:$0xf]
        %v577 = vld [vmem:[#allocation9 + $0x18] sm:$0xf]
        %v578 = vld [vmem:[#allocation9 + $0x1c] sm:$0xf]
        %v579 = vld [vmem:[#allocation9 + $0x20] sm:$0xf]
        %v580 = vld [vmem:[#allocation9 + $0x24] sm:$0xf]
        %v581 = vld [vmem:[#allocation9 + $0x28] sm:$0xf]
        %v582 = vld [vmem:[#allocation9 + $0x2c] sm:$0xf]
        %v583 = vld [vmem:[#allocation9 + $0x30] sm:$0xf]
        %v584 = vld [vmem:[#allocation9 + $0x34] sm:$0xf]
        %v585 = vld [vmem:[#allocation9 + $0x38] sm:$0xf]
        %v586 = vld [vmem:[#allocation9 + $0x3c] sm:$0xf]
        %v603 = vunpack.c.l.b16 %v571
        %v604 = vunpack.c.l.b16 %v572
        %v605 = vunpack.c.l.b16 %v573
        %v606 = vunpack.c.l.b16 %v574
        %v607 = vunpack.c.l.b16 %v575
        %v608 = vunpack.c.l.b16 %v576
        %v609 = vunpack.c.l.b16 %v577
        %v610 = vunpack.c.l.b16 %v578
        %v611 = vunpack.c.l.b16 %v579
        %v612 = vunpack.c.l.b16 %v580
        %v613 = vunpack.c.l.b16 %v581
        %v614 = vunpack.c.l.b16 %v582
        %v615 = vunpack.c.l.b16 %v583
        %v616 = vunpack.c.l.b16 %v584
        %v617 = vunpack.c.l.b16 %v585
        %v618 = vunpack.c.l.b16 %v586
        %v619 = vpack.c.b16 %v604, %v603
        %v620 = vpack.c.b16 %v606, %v605
        %v621 = vpack.c.b16 %v608, %v607
        %v622 = vpack.c.b16 %v610, %v609
        %v623 = vpack.c.b16 %v612, %v611
        %v624 = vpack.c.b16 %v614, %v613
        %v625 = vpack.c.b16 %v616, %v615
        %v626 = vpack.c.b16 %v618, %v617
        %635 = vmatprep.subr.bf16.mxu0 0
        %636 = vmatpush1.bf16.msra.mxu0 %v626
        %637 = vmatprep.subr.bf16.mxu0 0
        %638 = vmatpush1.bf16.msra.mxu0 %v625
        %639 = vmatprep.subr.bf16.mxu0 0
        %640 = vmatpush1.bf16.msra.mxu0 %v624
        %641 = vmatprep.subr.bf16.mxu0 0
        %642 = vmatpush1.bf16.msra.mxu0 %v623
        %643 = vmatprep.subr.bf16.mxu0 0
        %644 = vmatpush1.bf16.msra.mxu0 %v622
        %645 = vmatprep.subr.bf16.mxu0 0
        %646 = vmatpush1.bf16.msra.mxu0 %v621
        %647 = vmatprep.subr.bf16.mxu0 0
        %648 = vmatpush1.bf16.msra.mxu0 %v620
        %649 = vmatprep.subr.bf16.mxu0 0
        %650 = vmatpush1.bf16.msra.mxu0 %v619
        %651 = vmatprep.subr.bf16.mxu0 0
        %652 = vmatpush2.bf16.msra.mxu0 0
        %653 = vmatprep.subr.bf16.mxu0 0
        %654 = vmatpush2.bf16.msra.mxu0 0
        %655 = vmatprep.subr.bf16.mxu0 0
        %656 = vmatpush2.bf16.msra.mxu0 0
        %657 = vmatprep.subr.bf16.mxu0 0
        %658 = vmatpush2.bf16.msra.mxu0 0
        %659 = vmatprep.subr.bf16.mxu0 0
        %660 = vmatpush2.bf16.msra.mxu0 0
        %661 = vmatprep.subr.bf16.mxu0 0
        %662 = vmatpush2.bf16.msra.mxu0 0
        %663 = vmatprep.subr.bf16.mxu0 0
        %664 = vmatpush2.bf16.msra.mxu0 0
        %665 = vmatprep.subr.bf16.mxu0 0
        %666 = vmatpush2.bf16.msra.mxu0 0
        %667 = vmatprep.mubr.bf16.mxu0 0
        %668 = vmatmul.mubr.bf16.gmra.mxu0 %v523
        %v669 = vpop.f32.mrf.mxu0
        %v670 = vadd.f32 0.0, %v669
        %v671 = vpop.f32.mrf.mxu0
        %v672 = vpop.f32.mrf.mxu0
        %v673 = vadd.f32 0.0, %v672
        %v674 = vpop.f32.mrf.mxu0
        %675 = vmatprep.mubr.bf16.mxu0 0
        %676 = vmatmul.mubr.bf16.gmra.mxu0 %v524
        %v677 = vpop.f32.mrf.mxu0
        %v678 = vadd.f32 0.0, %v677
        %v679 = vpop.f32.mrf.mxu0
        %v680 = vpop.f32.mrf.mxu0
        %v681 = vadd.f32 0.0, %v680
        %v682 = vpop.f32.mrf.mxu0
        %683 = vmatprep.mubr.bf16.mxu0 0
        %684 = vmatmul.mubr.bf16.gmra.mxu0 %v525
        %v685 = vpop.f32.mrf.mxu0
        %v686 = vadd.f32 0.0, %v685
        %v687 = vpop.f32.mrf.mxu0
        %v688 = vpop.f32.mrf.mxu0
        %v689 = vadd.f32 0.0, %v688
        %v690 = vpop.f32.mrf.mxu0
        %691 = vmatprep.mubr.bf16.mxu0 0
        %692 = vmatmul.mubr.bf16.gmra.mxu0 %v526
        %v693 = vpop.f32.mrf.mxu0
        %v694 = vadd.f32 0.0, %v693
        %v695 = vpop.f32.mrf.mxu0
        %v696 = vpop.f32.mrf.mxu0
        %v697 = vadd.f32 0.0, %v696
        %v698 = vpop.f32.mrf.mxu0
        %699 = vmatprep.mubr.bf16.mxu0 0
        %700 = vmatmul.mubr.bf16.gmra.mxu0 %v527
        %v701 = vpop.f32.mrf.mxu0
        %v702 = vadd.f32 0.0, %v701
        %v703 = vpop.f32.mrf.mxu0
        %v704 = vpop.f32.mrf.mxu0
        %v705 = vadd.f32 0.0, %v704
        %v706 = vpop.f32.mrf.mxu0
        %707 = vmatprep.mubr.bf16.mxu0 0
        %708 = vmatmul.mubr.bf16.gmra.mxu0 %v528
        %v709 = vpop.f32.mrf.mxu0
        %v710 = vadd.f32 0.0, %v709
        %v711 = vpop.f32.mrf.mxu0
        %v712 = vpop.f32.mrf.mxu0
        %v713 = vadd.f32 0.0, %v712
        %v714 = vpop.f32.mrf.mxu0
        %715 = vmatprep.mubr.bf16.mxu0 0
        %716 = vmatmul.mubr.bf16.gmra.mxu0 %v529
        %v717 = vpop.f32.mrf.mxu0
        %v718 = vadd.f32 0.0, %v717
        %v719 = vpop.f32.mrf.mxu0
        %v720 = vpop.f32.mrf.mxu0
        %v721 = vadd.f32 0.0, %v720
        %v722 = vpop.f32.mrf.mxu0
        %723 = vmatprep.mubr.bf16.mxu0 0
        %724 = vmatmul.mubr.bf16.gmra.mxu0 %v530
        %v725 = vpop.f32.mrf.mxu0
        %v726 = vadd.f32 0.0, %v725
        %v727 = vpop.f32.mrf.mxu0
        %v728 = vpop.f32.mrf.mxu0
        %v729 = vadd.f32 0.0, %v728
        %v730 = vpop.f32.mrf.mxu0
        %731 = vmatprep.mubr.bf16.mxu0 0
        %732 = vmatmul.mubr.bf16.gmra.mxu0 %v531
        %v733 = vpop.f32.mrf.mxu0
        %v734 = vadd.f32 0.0, %v733
        %v735 = vpop.f32.mrf.mxu0
        %v736 = vpop.f32.mrf.mxu0
        %v737 = vadd.f32 0.0, %v736
        %v738 = vpop.f32.mrf.mxu0
        %739 = vmatprep.mubr.bf16.mxu0 0
        %740 = vmatmul.mubr.bf16.gmra.mxu0 %v532
        %v741 = vpop.f32.mrf.mxu0
        %v742 = vadd.f32 0.0, %v741
        %v743 = vpop.f32.mrf.mxu0
        %v744 = vpop.f32.mrf.mxu0
        %v745 = vadd.f32 0.0, %v744
        %v746 = vpop.f32.mrf.mxu0
        %747 = vmatprep.mubr.bf16.mxu0 0
        %748 = vmatmul.mubr.bf16.gmra.mxu0 %v533
        %v749 = vpop.f32.mrf.mxu0
        %v750 = vadd.f32 0.0, %v749
        %v751 = vpop.f32.mrf.mxu0
        %v752 = vpop.f32.mrf.mxu0
        %v753 = vadd.f32 0.0, %v752
        %v754 = vpop.f32.mrf.mxu0
        %755 = vmatprep.mubr.bf16.mxu0 0
        %756 = vmatmul.mubr.bf16.gmra.mxu0 %v534
        %v757 = vpop.f32.mrf.mxu0
        %v758 = vadd.f32 0.0, %v757
        %v759 = vpop.f32.mrf.mxu0
        %v760 = vpop.f32.mrf.mxu0
        %v761 = vadd.f32 0.0, %v760
        %v762 = vpop.f32.mrf.mxu0
        %763 = vmatprep.mubr.bf16.mxu0 0
        %764 = vmatmul.mubr.bf16.gmra.mxu0 %v535
        %v765 = vpop.f32.mrf.mxu0
        %v766 = vadd.f32 0.0, %v765
        %v767 = vpop.f32.mrf.mxu0
        %v768 = vpop.f32.mrf.mxu0
        %v769 = vadd.f32 0.0, %v768
        %v770 = vpop.f32.mrf.mxu0
        %771 = vmatprep.mubr.bf16.mxu0 0
        %772 = vmatmul.mubr.bf16.gmra.mxu0 %v536
        %v773 = vpop.f32.mrf.mxu0
        %v774 = vadd.f32 0.0, %v773
        %v775 = vpop.f32.mrf.mxu0
        %v776 = vpop.f32.mrf.mxu0
        %v777 = vadd.f32 0.0, %v776
        %v778 = vpop.f32.mrf.mxu0
        %779 = vmatprep.mubr.bf16.mxu0 0
        %780 = vmatmul.mubr.bf16.gmra.mxu0 %v537
        %v781 = vpop.f32.mrf.mxu0
        %v782 = vadd.f32 0.0, %v781
        %v783 = vpop.f32.mrf.mxu0
        %v784 = vpop.f32.mrf.mxu0
        %v785 = vadd.f32 0.0, %v784
        %v786 = vpop.f32.mrf.mxu0
        %787 = vmatprep.mubr.bf16.mxu0 0
        %788 = vmatmul.mubr.bf16.gmra.mxu0 %v538
        %v789 = vpop.f32.mrf.mxu0
        %v790 = vadd.f32 0.0, %v789
        %v791 = vpop.f32.mrf.mxu0
        %v792 = vpop.f32.mrf.mxu0
        %v793 = vadd.f32 0.0, %v792
        %v794 = vpop.f32.mrf.mxu0
        %795 = vdwg.mxu0
        %v796 = vadd.f32 %v539, %v670
        %v797 = vadd.f32 %v540, %v673
        %v798 = vadd.f32 %v541, %v678
        %v799 = vadd.f32 %v542, %v681
        %v800 = vadd.f32 %v543, %v686
        %v801 = vadd.f32 %v544, %v689
        %v802 = vadd.f32 %v545, %v694
        %v803 = vadd.f32 %v546, %v697
        %v804 = vadd.f32 %v547, %v702
        %v805 = vadd.f32 %v548, %v705
        %v806 = vadd.f32 %v549, %v710
        %v807 = vadd.f32 %v550, %v713
        %v808 = vadd.f32 %v551, %v718
        %v809 = vadd.f32 %v552, %v721
        %v810 = vadd.f32 %v553, %v726
        %v811 = vadd.f32 %v554, %v729
        %v812 = vadd.f32 %v555, %v734
        %v813 = vadd.f32 %v556, %v737
        %v814 = vadd.f32 %v557, %v742
        %v815 = vadd.f32 %v558, %v745
        %v816 = vadd.f32 %v559, %v750
        %v817 = vadd.f32 %v560, %v753
        %v818 = vadd.f32 %v561, %v758
        %v819 = vadd.f32 %v562, %v761
        %v820 = vadd.f32 %v563, %v766
        %v821 = vadd.f32 %v564, %v769
        %v822 = vadd.f32 %v565, %v774
        %v823 = vadd.f32 %v566, %v777
        %v824 = vadd.f32 %v567, %v782
        %v825 = vadd.f32 %v568, %v785
        %v826 = vadd.f32 %v569, %v790
        %v827 = vadd.f32 %v570, %v793
        %828 = vst [vmem:[#allocation2] sm:$0xff] %v796
        %829 = vst [vmem:[#allocation2 + $0x8] sm:$0xff] %v797
        %830 = vst [vmem:[#allocation2 + $0x10] sm:$0xff] %v798
        %831 = vst [vmem:[#allocation2 + $0x18] sm:$0xff] %v799
        %832 = vst [vmem:[#allocation2 + $0x20] sm:$0xff] %v800
        %833 = vst [vmem:[#allocation2 + $0x28] sm:$0xff] %v801
        %834 = vst [vmem:[#allocation2 + $0x30] sm:$0xff] %v802
        %835 = vst [vmem:[#allocation2 + $0x38] sm:$0xff] %v803
        %836 = vst [vmem:[#allocation2 + $0x40] sm:$0xff] %v804
        %837 = vst [vmem:[#allocation2 + $0x48] sm:$0xff] %v805
        %838 = vst [vmem:[#allocation2 + $0x50] sm:$0xff] %v806
        %839 = vst [vmem:[#allocation2 + $0x58] sm:$0xff] %v807
        %840 = vst [vmem:[#allocation2 + $0x60] sm:$0xff] %v808
        %841 = vst [vmem:[#allocation2 + $0x68] sm:$0xff] %v809
        %842 = vst [vmem:[#allocation2 + $0x70] sm:$0xff] %v810
        %843 = vst [vmem:[#allocation2 + $0x78] sm:$0xff] %v811
        %844 = vst [vmem:[#allocation2 + $0x80] sm:$0xff] %v812
        %845 = vst [vmem:[#allocation2 + $0x88] sm:$0xff] %v813
        %846 = vst [vmem:[#allocation2 + $0x90] sm:$0xff] %v814
        %847 = vst [vmem:[#allocation2 + $0x98] sm:$0xff] %v815
        %848 = vst [vmem:[#allocation2 + $0xa0] sm:$0xff] %v816
        %849 = vst [vmem:[#allocation2 + $0xa8] sm:$0xff] %v817
        %850 = vst [vmem:[#allocation2 + $0xb0] sm:$0xff] %v818
        %851 = vst [vmem:[#allocation2 + $0xb8] sm:$0xff] %v819
        %852 = vst [vmem:[#allocation2 + $0xc0] sm:$0xff] %v820
        %853 = vst [vmem:[#allocation2 + $0xc8] sm:$0xff] %v821
        %854 = vst [vmem:[#allocation2 + $0xd0] sm:$0xff] %v822
        %855 = vst [vmem:[#allocation2 + $0xd8] sm:$0xff] %v823
        %856 = vst [vmem:[#allocation2 + $0xe0] sm:$0xff] %v824
        %857 = vst [vmem:[#allocation2 + $0xe8] sm:$0xff] %v825
        %858 = vst [vmem:[#allocation2 + $0xf0] sm:$0xff] %v826
        %859 = vst [vmem:[#allocation2 + $0xf8] sm:$0xff] %v827
        %v860 = vld [vmem:[%s335] sm:$0xff]
        %v861 = vld [vmem:[%s335 + $0x8] sm:$0xff]
        %v862 = vld [vmem:[%s335 + $0x10] sm:$0xff]
        %v863 = vld [vmem:[%s335 + $0x18] sm:$0xff]
        %v864 = vld [vmem:[%s335 + $0x20] sm:$0xff]
        %v865 = vld [vmem:[%s335 + $0x28] sm:$0xff]
        %v866 = vld [vmem:[%s335 + $0x30] sm:$0xff]
        %v867 = vld [vmem:[%s335 + $0x38] sm:$0xff]
        %v868 = vld [vmem:[%s335 + $0x40] sm:$0xff]
        %v869 = vld [vmem:[%s335 + $0x48] sm:$0xff]
        %v870 = vld [vmem:[%s335 + $0x50] sm:$0xff]
        %v871 = vld [vmem:[%s335 + $0x58] sm:$0xff]
        %v872 = vld [vmem:[%s335 + $0x60] sm:$0xff]
        %v873 = vld [vmem:[%s335 + $0x68] sm:$0xff]
        %v874 = vld [vmem:[%s335 + $0x70] sm:$0xff]
        %v875 = vld [vmem:[%s335 + $0x78] sm:$0xff]
        %v876 = vld [vmem:[%s335 + $0x80] sm:$0xff]
        %v877 = vld [vmem:[%s335 + $0x88] sm:$0xff]
        %v878 = vld [vmem:[%s335 + $0x90] sm:$0xff]
        %v879 = vld [vmem:[%s335 + $0x98] sm:$0xff]
        %v880 = vld [vmem:[%s335 + $0xa0] sm:$0xff]
        %v881 = vld [vmem:[%s335 + $0xa8] sm:$0xff]
        %v882 = vld [vmem:[%s335 + $0xb0] sm:$0xff]
        %v883 = vld [vmem:[%s335 + $0xb8] sm:$0xff]
        %v884 = vld [vmem:[%s335 + $0xc0] sm:$0xff]
        %v885 = vld [vmem:[%s335 + $0xc8] sm:$0xff]
        %v886 = vld [vmem:[%s335 + $0xd0] sm:$0xff]
        %v887 = vld [vmem:[%s335 + $0xd8] sm:$0xff]
        %v888 = vld [vmem:[%s335 + $0xe0] sm:$0xff]
        %v889 = vld [vmem:[%s335 + $0xe8] sm:$0xff]
        %v890 = vld [vmem:[%s335 + $0xf0] sm:$0xff]
        %v891 = vld [vmem:[%s335 + $0xf8] sm:$0xff]
        %v892 = vpack.c.bf16 %v861, %v860
        %v893 = vpack.c.bf16 %v863, %v862
        %v894 = vpack.c.bf16 %v865, %v864
        %v895 = vpack.c.bf16 %v867, %v866
        %v896 = vpack.c.bf16 %v869, %v868
        %v897 = vpack.c.bf16 %v871, %v870
        %v898 = vpack.c.bf16 %v873, %v872
        %v899 = vpack.c.bf16 %v875, %v874
        %v900 = vpack.c.bf16 %v877, %v876
        %v901 = vpack.c.bf16 %v879, %v878
        %v902 = vpack.c.bf16 %v881, %v880
        %v903 = vpack.c.bf16 %v883, %v882
        %v904 = vpack.c.bf16 %v885, %v884
        %v905 = vpack.c.bf16 %v887, %v886
        %v906 = vpack.c.bf16 %v889, %v888
        %v907 = vpack.c.bf16 %v891, %v890
        %s908 = scalar_lea.vmem [#allocation2], 256
        %v909 = vld [vmem:[%s908] sm:$0xff]
        %v910 = vld [vmem:[%s908 + $0x8] sm:$0xff]
        %v911 = vld [vmem:[%s908 + $0x10] sm:$0xff]
        %v912 = vld [vmem:[%s908 + $0x18] sm:$0xff]
        %v913 = vld [vmem:[%s908 + $0x20] sm:$0xff]
        %v914 = vld [vmem:[%s908 + $0x28] sm:$0xff]
        %v915 = vld [vmem:[%s908 + $0x30] sm:$0xff]
        %v916 = vld [vmem:[%s908 + $0x38] sm:$0xff]
        %v917 = vld [vmem:[%s908 + $0x40] sm:$0xff]
        %v918 = vld [vmem:[%s908 + $0x48] sm:$0xff]
        %v919 = vld [vmem:[%s908 + $0x50] sm:$0xff]
        %v920 = vld [vmem:[%s908 + $0x58] sm:$0xff]
        %v921 = vld [vmem:[%s908 + $0x60] sm:$0xff]
        %v922 = vld [vmem:[%s908 + $0x68] sm:$0xff]
        %v923 = vld [vmem:[%s908 + $0x70] sm:$0xff]
        %v924 = vld [vmem:[%s908 + $0x78] sm:$0xff]
        %v925 = vld [vmem:[%s908 + $0x80] sm:$0xff]
        %v926 = vld [vmem:[%s908 + $0x88] sm:$0xff]
        %v927 = vld [vmem:[%s908 + $0x90] sm:$0xff]
        %v928 = vld [vmem:[%s908 + $0x98] sm:$0xff]
        %v929 = vld [vmem:[%s908 + $0xa0] sm:$0xff]
        %v930 = vld [vmem:[%s908 + $0xa8] sm:$0xff]
        %v931 = vld [vmem:[%s908 + $0xb0] sm:$0xff]
        %v932 = vld [vmem:[%s908 + $0xb8] sm:$0xff]
        %v933 = vld [vmem:[%s908 + $0xc0] sm:$0xff]
        %v934 = vld [vmem:[%s908 + $0xc8] sm:$0xff]
        %v935 = vld [vmem:[%s908 + $0xd0] sm:$0xff]
        %v936 = vld [vmem:[%s908 + $0xd8] sm:$0xff]
        %v937 = vld [vmem:[%s908 + $0xe0] sm:$0xff]
        %v938 = vld [vmem:[%s908 + $0xe8] sm:$0xff]
        %v939 = vld [vmem:[%s908 + $0xf0] sm:$0xff]
        %v940 = vld [vmem:[%s908 + $0xf8] sm:$0xff]
        %s941 = scalar_lea.vmem [#allocation9], 64
        %v942 = vld [vmem:[%s941] sm:$0xf]
        %v943 = vld [vmem:[%s941 + $0x4] sm:$0xf]
        %v944 = vld [vmem:[%s941 + $0x8] sm:$0xf]
        %v945 = vld [vmem:[%s941 + $0xc] sm:$0xf]
        %v946 = vld [vmem:[%s941 + $0x10] sm:$0xf]
        %v947 = vld [vmem:[%s941 + $0x14] sm:$0xf]
        %v948 = vld [vmem:[%s941 + $0x18] sm:$0xf]
        %v949 = vld [vmem:[%s941 + $0x1c] sm:$0xf]
        %v950 = vld [vmem:[%s941 + $0x20] sm:$0xf]
        %v951 = vld [vmem:[%s941 + $0x24] sm:$0xf]
        %v952 = vld [vmem:[%s941 + $0x28] sm:$0xf]
        %v953 = vld [vmem:[%s941 + $0x2c] sm:$0xf]
        %v954 = vld [vmem:[%s941 + $0x30] sm:$0xf]
        %v955 = vld [vmem:[%s941 + $0x34] sm:$0xf]
        %v956 = vld [vmem:[%s941 + $0x38] sm:$0xf]
        %v957 = vld [vmem:[%s941 + $0x3c] sm:$0xf]
        %v974 = vunpack.c.l.b16 %v942
        %v975 = vunpack.c.l.b16 %v943
        %v976 = vunpack.c.l.b16 %v944
        %v977 = vunpack.c.l.b16 %v945
        %v978 = vunpack.c.l.b16 %v946
        %v979 = vunpack.c.l.b16 %v947
        %v980 = vunpack.c.l.b16 %v948
        %v981 = vunpack.c.l.b16 %v949
        %v982 = vunpack.c.l.b16 %v950
        %v983 = vunpack.c.l.b16 %v951
        %v984 = vunpack.c.l.b16 %v952
        %v985 = vunpack.c.l.b16 %v953
        %v986 = vunpack.c.l.b16 %v954
        %v987 = vunpack.c.l.b16 %v955
        %v988 = vunpack.c.l.b16 %v956
        %v989 = vunpack.c.l.b16 %v957
        %v990 = vpack.c.b16 %v975, %v974
        %v991 = vpack.c.b16 %v977, %v976
        %v992 = vpack.c.b16 %v979, %v978
        %v993 = vpack.c.b16 %v981, %v980
        %v994 = vpack.c.b16 %v983, %v982
        %v995 = vpack.c.b16 %v985, %v984
        %v996 = vpack.c.b16 %v987, %v986
        %v997 = vpack.c.b16 %v989, %v988
        %1006 = vmatprep.subr.bf16.mxu0 0
        %1007 = vmatpush1.bf16.msra.mxu0 %v997
        %1008 = vmatprep.subr.bf16.mxu0 0
        %1009 = vmatpush1.bf16.msra.mxu0 %v996
        %1010 = vmatprep.subr.bf16.mxu0 0
        %1011 = vmatpush1.bf16.msra.mxu0 %v995
        %1012 = vmatprep.subr.bf16.mxu0 0
        %1013 = vmatpush1.bf16.msra.mxu0 %v994
        %1014 = vmatprep.subr.bf16.mxu0 0
        %1015 = vmatpush1.bf16.msra.mxu0 %v993
        %1016 = vmatprep.subr.bf16.mxu0 0
        %1017 = vmatpush1.bf16.msra.mxu0 %v992
        %1018 = vmatprep.subr.bf16.mxu0 0
        %1019 = vmatpush1.bf16.msra.mxu0 %v991
        %1020 = vmatprep.subr.bf16.mxu0 0
        %1021 = vmatpush1.bf16.msra.mxu0 %v990
        %1022 = vmatprep.subr.bf16.mxu0 0
        %1023 = vmatpush2.bf16.msra.mxu0 0
        %1024 = vmatprep.subr.bf16.mxu0 0
        %1025 = vmatpush2.bf16.msra.mxu0 0
        %1026 = vmatprep.subr.bf16.mxu0 0
        %1027 = vmatpush2.bf16.msra.mxu0 0
        %1028 = vmatprep.subr.bf16.mxu0 0
        %1029 = vmatpush2.bf16.msra.mxu0 0
        %1030 = vmatprep.subr.bf16.mxu0 0
        %1031 = vmatpush2.bf16.msra.mxu0 0
        %1032 = vmatprep.subr.bf16.mxu0 0
        %1033 = vmatpush2.bf16.msra.mxu0 0
        %1034 = vmatprep.subr.bf16.mxu0 0
        %1035 = vmatpush2.bf16.msra.mxu0 0
        %1036 = vmatprep.subr.bf16.mxu0 0
        %1037 = vmatpush2.bf16.msra.mxu0 0
        %1038 = vmatprep.mubr.bf16.mxu0 0
        %1039 = vmatmul.mubr.bf16.gmra.mxu0 %v892
        %v1040 = vpop.f32.mrf.mxu0
        %v1041 = vadd.f32 0.0, %v1040
        %v1042 = vpop.f32.mrf.mxu0
        %v1043 = vpop.f32.mrf.mxu0
        %v1044 = vadd.f32 0.0, %v1043
        %v1045 = vpop.f32.mrf.mxu0
        %1046 = vmatprep.mubr.bf16.mxu0 0
        %1047 = vmatmul.mubr.bf16.gmra.mxu0 %v893
        %v1048 = vpop.f32.mrf.mxu0
        %v1049 = vadd.f32 0.0, %v1048
        %v1050 = vpop.f32.mrf.mxu0
        %v1051 = vpop.f32.mrf.mxu0
        %v1052 = vadd.f32 0.0, %v1051
        %v1053 = vpop.f32.mrf.mxu0
        %1054 = vmatprep.mubr.bf16.mxu0 0
        %1055 = vmatmul.mubr.bf16.gmra.mxu0 %v894
        %v1056 = vpop.f32.mrf.mxu0
        %v1057 = vadd.f32 0.0, %v1056
        %v1058 = vpop.f32.mrf.mxu0
        %v1059 = vpop.f32.mrf.mxu0
        %v1060 = vadd.f32 0.0, %v1059
        %v1061 = vpop.f32.mrf.mxu0
        %1062 = vmatprep.mubr.bf16.mxu0 0
        %1063 = vmatmul.mubr.bf16.gmra.mxu0 %v895
        %v1064 = vpop.f32.mrf.mxu0
        %v1065 = vadd.f32 0.0, %v1064
        %v1066 = vpop.f32.mrf.mxu0
        %v1067 = vpop.f32.mrf.mxu0
        %v1068 = vadd.f32 0.0, %v1067
        %v1069 = vpop.f32.mrf.mxu0
        %1070 = vmatprep.mubr.bf16.mxu0 0
        %1071 = vmatmul.mubr.bf16.gmra.mxu0 %v896
        %v1072 = vpop.f32.mrf.mxu0
        %v1073 = vadd.f32 0.0, %v1072
        %v1074 = vpop.f32.mrf.mxu0
        %v1075 = vpop.f32.mrf.mxu0
        %v1076 = vadd.f32 0.0, %v1075
        %v1077 = vpop.f32.mrf.mxu0
        %1078 = vmatprep.mubr.bf16.mxu0 0
        %1079 = vmatmul.mubr.bf16.gmra.mxu0 %v897
        %v1080 = vpop.f32.mrf.mxu0
        %v1081 = vadd.f32 0.0, %v1080
        %v1082 = vpop.f32.mrf.mxu0
        %v1083 = vpop.f32.mrf.mxu0
        %v1084 = vadd.f32 0.0, %v1083
        %v1085 = vpop.f32.mrf.mxu0
        %1086 = vmatprep.mubr.bf16.mxu0 0
        %1087 = vmatmul.mubr.bf16.gmra.mxu0 %v898
        %v1088 = vpop.f32.mrf.mxu0
        %v1089 = vadd.f32 0.0, %v1088
        %v1090 = vpop.f32.mrf.mxu0
        %v1091 = vpop.f32.mrf.mxu0
        %v1092 = vadd.f32 0.0, %v1091
        %v1093 = vpop.f32.mrf.mxu0
        %1094 = vmatprep.mubr.bf16.mxu0 0
        %1095 = vmatmul.mubr.bf16.gmra.mxu0 %v899
        %v1096 = vpop.f32.mrf.mxu0
        %v1097 = vadd.f32 0.0, %v1096
        %v1098 = vpop.f32.mrf.mxu0
        %v1099 = vpop.f32.mrf.mxu0
        %v1100 = vadd.f32 0.0, %v1099
        %v1101 = vpop.f32.mrf.mxu0
        %1102 = vmatprep.mubr.bf16.mxu0 0
        %1103 = vmatmul.mubr.bf16.gmra.mxu0 %v900
        %v1104 = vpop.f32.mrf.mxu0
        %v1105 = vadd.f32 0.0, %v1104
        %v1106 = vpop.f32.mrf.mxu0
        %v1107 = vpop.f32.mrf.mxu0
        %v1108 = vadd.f32 0.0, %v1107
        %v1109 = vpop.f32.mrf.mxu0
        %1110 = vmatprep.mubr.bf16.mxu0 0
        %1111 = vmatmul.mubr.bf16.gmra.mxu0 %v901
        %v1112 = vpop.f32.mrf.mxu0
        %v1113 = vadd.f32 0.0, %v1112
        %v1114 = vpop.f32.mrf.mxu0
        %v1115 = vpop.f32.mrf.mxu0
        %v1116 = vadd.f32 0.0, %v1115
        %v1117 = vpop.f32.mrf.mxu0
        %1118 = vmatprep.mubr.bf16.mxu0 0
        %1119 = vmatmul.mubr.bf16.gmra.mxu0 %v902
        %v1120 = vpop.f32.mrf.mxu0
        %v1121 = vadd.f32 0.0, %v1120
        %v1122 = vpop.f32.mrf.mxu0
        %v1123 = vpop.f32.mrf.mxu0
        %v1124 = vadd.f32 0.0, %v1123
        %v1125 = vpop.f32.mrf.mxu0
        %1126 = vmatprep.mubr.bf16.mxu0 0
        %1127 = vmatmul.mubr.bf16.gmra.mxu0 %v903
        %v1128 = vpop.f32.mrf.mxu0
        %v1129 = vadd.f32 0.0, %v1128
        %v1130 = vpop.f32.mrf.mxu0
        %v1131 = vpop.f32.mrf.mxu0
        %v1132 = vadd.f32 0.0, %v1131
        %v1133 = vpop.f32.mrf.mxu0
        %1134 = vmatprep.mubr.bf16.mxu0 0
        %1135 = vmatmul.mubr.bf16.gmra.mxu0 %v904
        %v1136 = vpop.f32.mrf.mxu0
        %v1137 = vadd.f32 0.0, %v1136
        %v1138 = vpop.f32.mrf.mxu0
        %v1139 = vpop.f32.mrf.mxu0
        %v1140 = vadd.f32 0.0, %v1139
        %v1141 = vpop.f32.mrf.mxu0
        %1142 = vmatprep.mubr.bf16.mxu0 0
        %1143 = vmatmul.mubr.bf16.gmra.mxu0 %v905
        %v1144 = vpop.f32.mrf.mxu0
        %v1145 = vadd.f32 0.0, %v1144
        %v1146 = vpop.f32.mrf.mxu0
        %v1147 = vpop.f32.mrf.mxu0
        %v1148 = vadd.f32 0.0, %v1147
        %v1149 = vpop.f32.mrf.mxu0
        %1150 = vmatprep.mubr.bf16.mxu0 0
        %1151 = vmatmul.mubr.bf16.gmra.mxu0 %v906
        %v1152 = vpop.f32.mrf.mxu0
        %v1153 = vadd.f32 0.0, %v1152
        %v1154 = vpop.f32.mrf.mxu0
        %v1155 = vpop.f32.mrf.mxu0
        %v1156 = vadd.f32 0.0, %v1155
        %v1157 = vpop.f32.mrf.mxu0
        %1158 = vmatprep.mubr.bf16.mxu0 0
        %1159 = vmatmul.mubr.bf16.gmra.mxu0 %v907
        %v1160 = vpop.f32.mrf.mxu0
        %v1161 = vadd.f32 0.0, %v1160
        %v1162 = vpop.f32.mrf.mxu0
        %v1163 = vpop.f32.mrf.mxu0
        %v1164 = vadd.f32 0.0, %v1163
        %v1165 = vpop.f32.mrf.mxu0
        %1166 = vdwg.mxu0
        %v1167 = vadd.f32 %v909, %v1041
        %v1168 = vadd.f32 %v910, %v1044
        %v1169 = vadd.f32 %v911, %v1049
        %v1170 = vadd.f32 %v912, %v1052
        %v1171 = vadd.f32 %v913, %v1057
        %v1172 = vadd.f32 %v914, %v1060
        %v1173 = vadd.f32 %v915, %v1065
        %v1174 = vadd.f32 %v916, %v1068
        %v1175 = vadd.f32 %v917, %v1073
        %v1176 = vadd.f32 %v918, %v1076
        %v1177 = vadd.f32 %v919, %v1081
        %v1178 = vadd.f32 %v920, %v1084
        %v1179 = vadd.f32 %v921, %v1089
        %v1180 = vadd.f32 %v922, %v1092
        %v1181 = vadd.f32 %v923, %v1097
        %v1182 = vadd.f32 %v924, %v1100
        %v1183 = vadd.f32 %v925, %v1105
        %v1184 = vadd.f32 %v926, %v1108
        %v1185 = vadd.f32 %v927, %v1113
        %v1186 = vadd.f32 %v928, %v1116
        %v1187 = vadd.f32 %v929, %v1121
        %v1188 = vadd.f32 %v930, %v1124
        %v1189 = vadd.f32 %v931, %v1129
        %v1190 = vadd.f32 %v932, %v1132
        %v1191 = vadd.f32 %v933, %v1137
        %v1192 = vadd.f32 %v934, %v1140
        %v1193 = vadd.f32 %v935, %v1145
        %v1194 = vadd.f32 %v936, %v1148
        %v1195 = vadd.f32 %v937, %v1153
        %v1196 = vadd.f32 %v938, %v1156
        %v1197 = vadd.f32 %v939, %v1161
        %v1198 = vadd.f32 %v940, %v1164
        %1199 = vst [vmem:[%s908] sm:$0xff] %v1167
        %1200 = vst [vmem:[%s908 + $0x8] sm:$0xff] %v1168
        %1201 = vst [vmem:[%s908 + $0x10] sm:$0xff] %v1169
        %1202 = vst [vmem:[%s908 + $0x18] sm:$0xff] %v1170
        %1203 = vst [vmem:[%s908 + $0x20] sm:$0xff] %v1171
        %1204 = vst [vmem:[%s908 + $0x28] sm:$0xff] %v1172
        %1205 = vst [vmem:[%s908 + $0x30] sm:$0xff] %v1173
        %1206 = vst [vmem:[%s908 + $0x38] sm:$0xff] %v1174
        %1207 = vst [vmem:[%s908 + $0x40] sm:$0xff] %v1175
        %1208 = vst [vmem:[%s908 + $0x48] sm:$0xff] %v1176
        %1209 = vst [vmem:[%s908 + $0x50] sm:$0xff] %v1177
        %1210 = vst [vmem:[%s908 + $0x58] sm:$0xff] %v1178
        %1211 = vst [vmem:[%s908 + $0x60] sm:$0xff] %v1179
        %1212 = vst [vmem:[%s908 + $0x68] sm:$0xff] %v1180
        %1213 = vst [vmem:[%s908 + $0x70] sm:$0xff] %v1181
        %1214 = vst [vmem:[%s908 + $0x78] sm:$0xff] %v1182
        %1215 = vst [vmem:[%s908 + $0x80] sm:$0xff] %v1183
        %1216 = vst [vmem:[%s908 + $0x88] sm:$0xff] %v1184
        %1217 = vst [vmem:[%s908 + $0x90] sm:$0xff] %v1185
        %1218 = vst [vmem:[%s908 + $0x98] sm:$0xff] %v1186
        %1219 = vst [vmem:[%s908 + $0xa0] sm:$0xff] %v1187
        %1220 = vst [vmem:[%s908 + $0xa8] sm:$0xff] %v1188
        %1221 = vst [vmem:[%s908 + $0xb0] sm:$0xff] %v1189
        %1222 = vst [vmem:[%s908 + $0xb8] sm:$0xff] %v1190
        %1223 = vst [vmem:[%s908 + $0xc0] sm:$0xff] %v1191
        %1224 = vst [vmem:[%s908 + $0xc8] sm:$0xff] %v1192
        %1225 = vst [vmem:[%s908 + $0xd0] sm:$0xff] %v1193
        %1226 = vst [vmem:[%s908 + $0xd8] sm:$0xff] %v1194
        %1227 = vst [vmem:[%s908 + $0xe0] sm:$0xff] %v1195
        %1228 = vst [vmem:[%s908 + $0xe8] sm:$0xff] %v1196
        %1229 = vst [vmem:[%s908 + $0xf0] sm:$0xff] %v1197
        %1230 = vst [vmem:[%s908 + $0xf8] sm:$0xff] %v1198
        %v1231 = vld [vmem:[%s344] sm:$0xff]
        %v1232 = vld [vmem:[%s344 + $0x8] sm:$0xff]
        %v1233 = vld [vmem:[%s344 + $0x10] sm:$0xff]
        %v1234 = vld [vmem:[%s344 + $0x18] sm:$0xff]
        %v1235 = vld [vmem:[%s344 + $0x20] sm:$0xff]
        %v1236 = vld [vmem:[%s344 + $0x28] sm:$0xff]
        %v1237 = vld [vmem:[%s344 + $0x30] sm:$0xff]
        %v1238 = vld [vmem:[%s344 + $0x38] sm:$0xff]
        %v1239 = vld [vmem:[%s344 + $0x40] sm:$0xff]
        %v1240 = vld [vmem:[%s344 + $0x48] sm:$0xff]
        %v1241 = vld [vmem:[%s344 + $0x50] sm:$0xff]
        %v1242 = vld [vmem:[%s344 + $0x58] sm:$0xff]
        %v1243 = vld [vmem:[%s344 + $0x60] sm:$0xff]
        %v1244 = vld [vmem:[%s344 + $0x68] sm:$0xff]
        %v1245 = vld [vmem:[%s344 + $0x70] sm:$0xff]
        %v1246 = vld [vmem:[%s344 + $0x78] sm:$0xff]
        %v1247 = vld [vmem:[%s344 + $0x80] sm:$0xff]
        %v1248 = vld [vmem:[%s344 + $0x88] sm:$0xff]
        %v1249 = vld [vmem:[%s344 + $0x90] sm:$0xff]
        %v1250 = vld [vmem:[%s344 + $0x98] sm:$0xff]
        %v1251 = vld [vmem:[%s344 + $0xa0] sm:$0xff]
        %v1252 = vld [vmem:[%s344 + $0xa8] sm:$0xff]
        %v1253 = vld [vmem:[%s344 + $0xb0] sm:$0xff]
        %v1254 = vld [vmem:[%s344 + $0xb8] sm:$0xff]
        %v1255 = vld [vmem:[%s344 + $0xc0] sm:$0xff]
        %v1256 = vld [vmem:[%s344 + $0xc8] sm:$0xff]
        %v1257 = vld [vmem:[%s344 + $0xd0] sm:$0xff]
        %v1258 = vld [vmem:[%s344 + $0xd8] sm:$0xff]
        %v1259 = vld [vmem:[%s344 + $0xe0] sm:$0xff]
        %v1260 = vld [vmem:[%s344 + $0xe8] sm:$0xff]
        %v1261 = vld [vmem:[%s344 + $0xf0] sm:$0xff]
        %v1262 = vld [vmem:[%s344 + $0xf8] sm:$0xff]
        %v1263 = vpack.c.bf16 %v1232, %v1231
        %v1264 = vpack.c.bf16 %v1234, %v1233
        %v1265 = vpack.c.bf16 %v1236, %v1235
        %v1266 = vpack.c.bf16 %v1238, %v1237
        %v1267 = vpack.c.bf16 %v1240, %v1239
        %v1268 = vpack.c.bf16 %v1242, %v1241
        %v1269 = vpack.c.bf16 %v1244, %v1243
        %v1270 = vpack.c.bf16 %v1246, %v1245
        %v1271 = vpack.c.bf16 %v1248, %v1247
        %v1272 = vpack.c.bf16 %v1250, %v1249
        %v1273 = vpack.c.bf16 %v1252, %v1251
        %v1274 = vpack.c.bf16 %v1254, %v1253
        %v1275 = vpack.c.bf16 %v1256, %v1255
        %v1276 = vpack.c.bf16 %v1258, %v1257
        %v1277 = vpack.c.bf16 %v1260, %v1259
        %v1278 = vpack.c.bf16 %v1262, %v1261
        %s1279 = scalar_lea.vmem [#allocation2], 512
        %v1280 = vld [vmem:[%s1279] sm:$0xff]
        %v1281 = vld [vmem:[%s1279 + $0x8] sm:$0xff]
        %v1282 = vld [vmem:[%s1279 + $0x10] sm:$0xff]
        %v1283 = vld [vmem:[%s1279 + $0x18] sm:$0xff]
        %v1284 = vld [vmem:[%s1279 + $0x20] sm:$0xff]
        %v1285 = vld [vmem:[%s1279 + $0x28] sm:$0xff]
        %v1286 = vld [vmem:[%s1279 + $0x30] sm:$0xff]
        %v1287 = vld [vmem:[%s1279 + $0x38] sm:$0xff]
        %v1288 = vld [vmem:[%s1279 + $0x40] sm:$0xff]
        %v1289 = vld [vmem:[%s1279 + $0x48] sm:$0xff]
        %v1290 = vld [vmem:[%s1279 + $0x50] sm:$0xff]
        %v1291 = vld [vmem:[%s1279 + $0x58] sm:$0xff]
        %v1292 = vld [vmem:[%s1279 + $0x60] sm:$0xff]
        %v1293 = vld [vmem:[%s1279 + $0x68] sm:$0xff]
        %v1294 = vld [vmem:[%s1279 + $0x70] sm:$0xff]
        %v1295 = vld [vmem:[%s1279 + $0x78] sm:$0xff]
        %v1296 = vld [vmem:[%s1279 + $0x80] sm:$0xff]
        %v1297 = vld [vmem:[%s1279 + $0x88] sm:$0xff]
        %v1298 = vld [vmem:[%s1279 + $0x90] sm:$0xff]
        %v1299 = vld [vmem:[%s1279 + $0x98] sm:$0xff]
        %v1300 = vld [vmem:[%s1279 + $0xa0] sm:$0xff]
        %v1301 = vld [vmem:[%s1279 + $0xa8] sm:$0xff]
        %v1302 = vld [vmem:[%s1279 + $0xb0] sm:$0xff]
        %v1303 = vld [vmem:[%s1279 + $0xb8] sm:$0xff]
        %v1304 = vld [vmem:[%s1279 + $0xc0] sm:$0xff]
        %v1305 = vld [vmem:[%s1279 + $0xc8] sm:$0xff]
        %v1306 = vld [vmem:[%s1279 + $0xd0] sm:$0xff]
        %v1307 = vld [vmem:[%s1279 + $0xd8] sm:$0xff]
        %v1308 = vld [vmem:[%s1279 + $0xe0] sm:$0xff]
        %v1309 = vld [vmem:[%s1279 + $0xe8] sm:$0xff]
        %v1310 = vld [vmem:[%s1279 + $0xf0] sm:$0xff]
        %v1311 = vld [vmem:[%s1279 + $0xf8] sm:$0xff]
        %s1312 = scalar_lea.vmem [#allocation9], 128
        %v1313 = vld [vmem:[%s1312] sm:$0xf]
        %v1314 = vld [vmem:[%s1312 + $0x4] sm:$0xf]
        %v1315 = vld [vmem:[%s1312 + $0x8] sm:$0xf]
        %v1316 = vld [vmem:[%s1312 + $0xc] sm:$0xf]
        %v1317 = vld [vmem:[%s1312 + $0x10] sm:$0xf]
        %v1318 = vld [vmem:[%s1312 + $0x14] sm:$0xf]
        %v1319 = vld [vmem:[%s1312 + $0x18] sm:$0xf]
        %v1320 = vld [vmem:[%s1312 + $0x1c] sm:$0xf]
        %v1321 = vld [vmem:[%s1312 + $0x20] sm:$0xf]
        %v1322 = vld [vmem:[%s1312 + $0x24] sm:$0xf]
        %v1323 = vld [vmem:[%s1312 + $0x28] sm:$0xf]
        %v1324 = vld [vmem:[%s1312 + $0x2c] sm:$0xf]
        %v1325 = vld [vmem:[%s1312 + $0x30] sm:$0xf]
        %v1326 = vld [vmem:[%s1312 + $0x34] sm:$0xf]
        %v1327 = vld [vmem:[%s1312 + $0x38] sm:$0xf]
        %v1328 = vld [vmem:[%s1312 + $0x3c] sm:$0xf]
        %v1345 = vunpack.c.l.b16 %v1313
        %v1346 = vunpack.c.l.b16 %v1314
        %v1347 = vunpack.c.l.b16 %v1315
        %v1348 = vunpack.c.l.b16 %v1316
        %v1349 = vunpack.c.l.b16 %v1317
        %v1350 = vunpack.c.l.b16 %v1318
        %v1351 = vunpack.c.l.b16 %v1319
        %v1352 = vunpack.c.l.b16 %v1320
        %v1353 = vunpack.c.l.b16 %v1321
        %v1354 = vunpack.c.l.b16 %v1322
        %v1355 = vunpack.c.l.b16 %v1323
        %v1356 = vunpack.c.l.b16 %v1324
        %v1357 = vunpack.c.l.b16 %v1325
        %v1358 = vunpack.c.l.b16 %v1326
        %v1359 = vunpack.c.l.b16 %v1327
        %v1360 = vunpack.c.l.b16 %v1328
        %v1361 = vpack.c.b16 %v1346, %v1345
        %v1362 = vpack.c.b16 %v1348, %v1347
        %v1363 = vpack.c.b16 %v1350, %v1349
        %v1364 = vpack.c.b16 %v1352, %v1351
        %v1365 = vpack.c.b16 %v1354, %v1353
        %v1366 = vpack.c.b16 %v1356, %v1355
        %v1367 = vpack.c.b16 %v1358, %v1357
        %v1368 = vpack.c.b16 %v1360, %v1359
        %1377 = vmatprep.subr.bf16.mxu0 0
        %1378 = vmatpush1.bf16.msra.mxu0 %v1368
        %1379 = vmatprep.subr.bf16.mxu0 0
        %1380 = vmatpush1.bf16.msra.mxu0 %v1367
        %1381 = vmatprep.subr.bf16.mxu0 0
        %1382 = vmatpush1.bf16.msra.mxu0 %v1366
        %1383 = vmatprep.subr.bf16.mxu0 0
        %1384 = vmatpush1.bf16.msra.mxu0 %v1365
        %1385 = vmatprep.subr.bf16.mxu0 0
        %1386 = vmatpush1.bf16.msra.mxu0 %v1364
        %1387 = vmatprep.subr.bf16.mxu0 0
        %1388 = vmatpush1.bf16.msra.mxu0 %v1363
        %1389 = vmatprep.subr.bf16.mxu0 0
        %1390 = vmatpush1.bf16.msra.mxu0 %v1362
        %1391 = vmatprep.subr.bf16.mxu0 0
        %1392 = vmatpush1.bf16.msra.mxu0 %v1361
        %1393 = vmatprep.subr.bf16.mxu0 0
        %1394 = vmatpush2.bf16.msra.mxu0 0
        %1395 = vmatprep.subr.bf16.mxu0 0
        %1396 = vmatpush2.bf16.msra.mxu0 0
        %1397 = vmatprep.subr.bf16.mxu0 0
        %1398 = vmatpush2.bf16.msra.mxu0 0
        %1399 = vmatprep.subr.bf16.mxu0 0
        %1400 = vmatpush2.bf16.msra.mxu0 0
        %1401 = vmatprep.subr.bf16.mxu0 0
        %1402 = vmatpush2.bf16.msra.mxu0 0
        %1403 = vmatprep.subr.bf16.mxu0 0
        %1404 = vmatpush2.bf16.msra.mxu0 0
        %1405 = vmatprep.subr.bf16.mxu0 0
        %1406 = vmatpush2.bf16.msra.mxu0 0
        %1407 = vmatprep.subr.bf16.mxu0 0
        %1408 = vmatpush2.bf16.msra.mxu0 0
        %1409 = vmatprep.mubr.bf16.mxu0 0
        %1410 = vmatmul.mubr.bf16.gmra.mxu0 %v1263
        %v1411 = vpop.f32.mrf.mxu0
        %v1412 = vadd.f32 0.0, %v1411
        %v1413 = vpop.f32.mrf.mxu0
        %v1414 = vpop.f32.mrf.mxu0
        %v1415 = vadd.f32 0.0, %v1414
        %v1416 = vpop.f32.mrf.mxu0
        %1417 = vmatprep.mubr.bf16.mxu0 0
        %1418 = vmatmul.mubr.bf16.gmra.mxu0 %v1264
        %v1419 = vpop.f32.mrf.mxu0
        %v1420 = vadd.f32 0.0, %v1419
        %v1421 = vpop.f32.mrf.mxu0
        %v1422 = vpop.f32.mrf.mxu0
        %v1423 = vadd.f32 0.0, %v1422
        %v1424 = vpop.f32.mrf.mxu0
        %1425 = vmatprep.mubr.bf16.mxu0 0
        %1426 = vmatmul.mubr.bf16.gmra.mxu0 %v1265
        %v1427 = vpop.f32.mrf.mxu0
        %v1428 = vadd.f32 0.0, %v1427
        %v1429 = vpop.f32.mrf.mxu0
        %v1430 = vpop.f32.mrf.mxu0
        %v1431 = vadd.f32 0.0, %v1430
        %v1432 = vpop.f32.mrf.mxu0
        %1433 = vmatprep.mubr.bf16.mxu0 0
        %1434 = vmatmul.mubr.bf16.gmra.mxu0 %v1266
        %v1435 = vpop.f32.mrf.mxu0
        %v1436 = vadd.f32 0.0, %v1435
        %v1437 = vpop.f32.mrf.mxu0
        %v1438 = vpop.f32.mrf.mxu0
        %v1439 = vadd.f32 0.0, %v1438
        %v1440 = vpop.f32.mrf.mxu0
        %1441 = vmatprep.mubr.bf16.mxu0 0
        %1442 = vmatmul.mubr.bf16.gmra.mxu0 %v1267
        %v1443 = vpop.f32.mrf.mxu0
        %v1444 = vadd.f32 0.0, %v1443
        %v1445 = vpop.f32.mrf.mxu0
        %v1446 = vpop.f32.mrf.mxu0
        %v1447 = vadd.f32 0.0, %v1446
        %v1448 = vpop.f32.mrf.mxu0
        %1449 = vmatprep.mubr.bf16.mxu0 0
        %1450 = vmatmul.mubr.bf16.gmra.mxu0 %v1268
        %v1451 = vpop.f32.mrf.mxu0
        %v1452 = vadd.f32 0.0, %v1451
        %v1453 = vpop.f32.mrf.mxu0
        %v1454 = vpop.f32.mrf.mxu0
        %v1455 = vadd.f32 0.0, %v1454
        %v1456 = vpop.f32.mrf.mxu0
        %1457 = vmatprep.mubr.bf16.mxu0 0
        %1458 = vmatmul.mubr.bf16.gmra.mxu0 %v1269
        %v1459 = vpop.f32.mrf.mxu0
        %v1460 = vadd.f32 0.0, %v1459
        %v1461 = vpop.f32.mrf.mxu0
        %v1462 = vpop.f32.mrf.mxu0
        %v1463 = vadd.f32 0.0, %v1462
        %v1464 = vpop.f32.mrf.mxu0
        %1465 = vmatprep.mubr.bf16.mxu0 0
        %1466 = vmatmul.mubr.bf16.gmra.mxu0 %v1270
        %v1467 = vpop.f32.mrf.mxu0
        %v1468 = vadd.f32 0.0, %v1467
        %v1469 = vpop.f32.mrf.mxu0
        %v1470 = vpop.f32.mrf.mxu0
        %v1471 = vadd.f32 0.0, %v1470
        %v1472 = vpop.f32.mrf.mxu0
        %1473 = vmatprep.mubr.bf16.mxu0 0
        %1474 = vmatmul.mubr.bf16.gmra.mxu0 %v1271
        %v1475 = vpop.f32.mrf.mxu0
        %v1476 = vadd.f32 0.0, %v1475
        %v1477 = vpop.f32.mrf.mxu0
        %v1478 = vpop.f32.mrf.mxu0
        %v1479 = vadd.f32 0.0, %v1478
        %v1480 = vpop.f32.mrf.mxu0
        %1481 = vmatprep.mubr.bf16.mxu0 0
        %1482 = vmatmul.mubr.bf16.gmra.mxu0 %v1272
        %v1483 = vpop.f32.mrf.mxu0
        %v1484 = vadd.f32 0.0, %v1483
        %v1485 = vpop.f32.mrf.mxu0
        %v1486 = vpop.f32.mrf.mxu0
        %v1487 = vadd.f32 0.0, %v1486
        %v1488 = vpop.f32.mrf.mxu0
        %1489 = vmatprep.mubr.bf16.mxu0 0
        %1490 = vmatmul.mubr.bf16.gmra.mxu0 %v1273
        %v1491 = vpop.f32.mrf.mxu0
        %v1492 = vadd.f32 0.0, %v1491
        %v1493 = vpop.f32.mrf.mxu0
        %v1494 = vpop.f32.mrf.mxu0
        %v1495 = vadd.f32 0.0, %v1494
        %v1496 = vpop.f32.mrf.mxu0
        %1497 = vmatprep.mubr.bf16.mxu0 0
        %1498 = vmatmul.mubr.bf16.gmra.mxu0 %v1274
        %v1499 = vpop.f32.mrf.mxu0
        %v1500 = vadd.f32 0.0, %v1499
        %v1501 = vpop.f32.mrf.mxu0
        %v1502 = vpop.f32.mrf.mxu0
        %v1503 = vadd.f32 0.0, %v1502
        %v1504 = vpop.f32.mrf.mxu0
        %1505 = vmatprep.mubr.bf16.mxu0 0
        %1506 = vmatmul.mubr.bf16.gmra.mxu0 %v1275
        %v1507 = vpop.f32.mrf.mxu0
        %v1508 = vadd.f32 0.0, %v1507
        %v1509 = vpop.f32.mrf.mxu0
        %v1510 = vpop.f32.mrf.mxu0
        %v1511 = vadd.f32 0.0, %v1510
        %v1512 = vpop.f32.mrf.mxu0
        %1513 = vmatprep.mubr.bf16.mxu0 0
        %1514 = vmatmul.mubr.bf16.gmra.mxu0 %v1276
        %v1515 = vpop.f32.mrf.mxu0
        %v1516 = vadd.f32 0.0, %v1515
        %v1517 = vpop.f32.mrf.mxu0
        %v1518 = vpop.f32.mrf.mxu0
        %v1519 = vadd.f32 0.0, %v1518
        %v1520 = vpop.f32.mrf.mxu0
        %1521 = vmatprep.mubr.bf16.mxu0 0
        %1522 = vmatmul.mubr.bf16.gmra.mxu0 %v1277
        %v1523 = vpop.f32.mrf.mxu0
        %v1524 = vadd.f32 0.0, %v1523
        %v1525 = vpop.f32.mrf.mxu0
        %v1526 = vpop.f32.mrf.mxu0
        %v1527 = vadd.f32 0.0, %v1526
        %v1528 = vpop.f32.mrf.mxu0
        %1529 = vmatprep.mubr.bf16.mxu0 0
        %1530 = vmatmul.mubr.bf16.gmra.mxu0 %v1278
        %v1531 = vpop.f32.mrf.mxu0
        %v1532 = vadd.f32 0.0, %v1531
        %v1533 = vpop.f32.mrf.mxu0
        %v1534 = vpop.f32.mrf.mxu0
        %v1535 = vadd.f32 0.0, %v1534
        %v1536 = vpop.f32.mrf.mxu0
        %1537 = vdwg.mxu0
        %v1538 = vadd.f32 %v1280, %v1412
        %v1539 = vadd.f32 %v1281, %v1415
        %v1540 = vadd.f32 %v1282, %v1420
        %v1541 = vadd.f32 %v1283, %v1423
        %v1542 = vadd.f32 %v1284, %v1428
        %v1543 = vadd.f32 %v1285, %v1431
        %v1544 = vadd.f32 %v1286, %v1436
        %v1545 = vadd.f32 %v1287, %v1439
        %v1546 = vadd.f32 %v1288, %v1444
        %v1547 = vadd.f32 %v1289, %v1447
        %v1548 = vadd.f32 %v1290, %v1452
        %v1549 = vadd.f32 %v1291, %v1455
        %v1550 = vadd.f32 %v1292, %v1460
        %v1551 = vadd.f32 %v1293, %v1463
        %v1552 = vadd.f32 %v1294, %v1468
        %v1553 = vadd.f32 %v1295, %v1471
        %v1554 = vadd.f32 %v1296, %v1476
        %v1555 = vadd.f32 %v1297, %v1479
        %v1556 = vadd.f32 %v1298, %v1484
        %v1557 = vadd.f32 %v1299, %v1487
        %v1558 = vadd.f32 %v1300, %v1492
        %v1559 = vadd.f32 %v1301, %v1495
        %v1560 = vadd.f32 %v1302, %v1500
        %v1561 = vadd.f32 %v1303, %v1503
        %v1562 = vadd.f32 %v1304, %v1508
        %v1563 = vadd.f32 %v1305, %v1511
        %v1564 = vadd.f32 %v1306, %v1516
        %v1565 = vadd.f32 %v1307, %v1519
        %v1566 = vadd.f32 %v1308, %v1524
        %v1567 = vadd.f32 %v1309, %v1527
        %v1568 = vadd.f32 %v1310, %v1532
        %v1569 = vadd.f32 %v1311, %v1535
        %1570 = vst [vmem:[%s1279] sm:$0xff] %v1538
        %1571 = vst [vmem:[%s1279 + $0x8] sm:$0xff] %v1539
        %1572 = vst [vmem:[%s1279 + $0x10] sm:$0xff] %v1540
        %1573 = vst [vmem:[%s1279 + $0x18] sm:$0xff] %v1541
        %1574 = vst [vmem:[%s1279 + $0x20] sm:$0xff] %v1542
        %1575 = vst [vmem:[%s1279 + $0x28] sm:$0xff] %v1543
        %1576 = vst [vmem:[%s1279 + $0x30] sm:$0xff] %v1544
        %1577 = vst [vmem:[%s1279 + $0x38] sm:$0xff] %v1545
        %1578 = vst [vmem:[%s1279 + $0x40] sm:$0xff] %v1546
        %1579 = vst [vmem:[%s1279 + $0x48] sm:$0xff] %v1547
        %1580 = vst [vmem:[%s1279 + $0x50] sm:$0xff] %v1548
        %1581 = vst [vmem:[%s1279 + $0x58] sm:$0xff] %v1549
        %1582 = vst [vmem:[%s1279 + $0x60] sm:$0xff] %v1550
        %1583 = vst [vmem:[%s1279 + $0x68] sm:$0xff] %v1551
        %1584 = vst [vmem:[%s1279 + $0x70] sm:$0xff] %v1552
        %1585 = vst [vmem:[%s1279 + $0x78] sm:$0xff] %v1553
        %1586 = vst [vmem:[%s1279 + $0x80] sm:$0xff] %v1554
        %1587 = vst [vmem:[%s1279 + $0x88] sm:$0xff] %v1555
        %1588 = vst [vmem:[%s1279 + $0x90] sm:$0xff] %v1556
        %1589 = vst [vmem:[%s1279 + $0x98] sm:$0xff] %v1557
        %1590 = vst [vmem:[%s1279 + $0xa0] sm:$0xff] %v1558
        %1591 = vst [vmem:[%s1279 + $0xa8] sm:$0xff] %v1559
        %1592 = vst [vmem:[%s1279 + $0xb0] sm:$0xff] %v1560
        %1593 = vst [vmem:[%s1279 + $0xb8] sm:$0xff] %v1561
        %1594 = vst [vmem:[%s1279 + $0xc0] sm:$0xff] %v1562
        %1595 = vst [vmem:[%s1279 + $0xc8] sm:$0xff] %v1563
        %1596 = vst [vmem:[%s1279 + $0xd0] sm:$0xff] %v1564
        %1597 = vst [vmem:[%s1279 + $0xd8] sm:$0xff] %v1565
        %1598 = vst [vmem:[%s1279 + $0xe0] sm:$0xff] %v1566
        %1599 = vst [vmem:[%s1279 + $0xe8] sm:$0xff] %v1567
        %1600 = vst [vmem:[%s1279 + $0xf0] sm:$0xff] %v1568
        %1601 = vst [vmem:[%s1279 + $0xf8] sm:$0xff] %v1569
        // Predicated region
        $region61: #{tpu_custom_call.1} parent=39 // pred_check
          %p1602 = pneg %p391
        $region62: #{tpu_custom_call.1} parent=39 // pred_check_branch
          %1604 = sbr.rel (%p1602) target = $region64
        $region63: #{tpu_custom_call.1} parent=39 // pred_region
          %v1605 = vld [vmem:[%s4] sm:$0x7]
          %v1606 = vld [vmem:[#allocation2] sm:$0xff]
          %v1607 = vld [vmem:[#allocation2 + $0x8] sm:$0xff]
          %v1608 = vld [vmem:[#allocation2 + $0x10] sm:$0xff]
          %v1609 = vld [vmem:[#allocation2 + $0x18] sm:$0xff]
          %v1610 = vld [vmem:[#allocation2 + $0x20] sm:$0xff]
          %v1611 = vld [vmem:[#allocation2 + $0x28] sm:$0xff]
          %v1612 = vld [vmem:[#allocation2 + $0x30] sm:$0xff]
          %v1613 = vld [vmem:[#allocation2 + $0x38] sm:$0xff]
          %v1614 = vld [vmem:[#allocation2 + $0x40] sm:$0xff]
          %v1615 = vld [vmem:[#allocation2 + $0x48] sm:$0xff]
          %v1616 = vld [vmem:[#allocation2 + $0x50] sm:$0xff]
          %v1617 = vld [vmem:[#allocation2 + $0x58] sm:$0xff]
          %v1618 = vld [vmem:[#allocation2 + $0x60] sm:$0xff]
          %v1619 = vld [vmem:[#allocation2 + $0x68] sm:$0xff]
          %v1620 = vld [vmem:[#allocation2 + $0x70] sm:$0xff]
          %v1621 = vld [vmem:[#allocation2 + $0x78] sm:$0xff]
          %v1622 = vld [vmem:[#allocation2 + $0x80] sm:$0xff]
          %v1623 = vld [vmem:[#allocation2 + $0x88] sm:$0xff]
          %v1624 = vld [vmem:[#allocation2 + $0x90] sm:$0xff]
          %v1625 = vld [vmem:[#allocation2 + $0x98] sm:$0xff]
          %v1626 = vld [vmem:[#allocation2 + $0xa0] sm:$0xff]
          %v1627 = vld [vmem:[#allocation2 + $0xa8] sm:$0xff]
          %v1628 = vld [vmem:[#allocation2 + $0xb0] sm:$0xff]
          %v1629 = vld [vmem:[#allocation2 + $0xb8] sm:$0xff]
          %v1630 = vld [vmem:[#allocation2 + $0xc0] sm:$0xff]
          %v1631 = vld [vmem:[#allocation2 + $0xc8] sm:$0xff]
          %v1632 = vld [vmem:[#allocation2 + $0xd0] sm:$0xff]
          %v1633 = vld [vmem:[#allocation2 + $0xd8] sm:$0xff]
          %v1634 = vld [vmem:[#allocation2 + $0xe0] sm:$0xff]
          %v1635 = vld [vmem:[#allocation2 + $0xe8] sm:$0xff]
          %v1636 = vld [vmem:[#allocation2 + $0xf0] sm:$0xff]
          %v1637 = vld [vmem:[#allocation2 + $0xf8] sm:$0xff]
          %v1638 = vlaneseq
          %v1639 = vshrl.u32 %v1638, 7
          %v1640 = vsub.s32 0, %v1639
          %v1641 = vrot.slane %v1605, %v1640
          %v1642 = vadd.f32 %v1606, %v1641
          %v1643 = vadd.f32 %v1607, %v1641
          %v1644 = vadd.f32 %v1608, %v1641
          %v1645 = vadd.f32 %v1609, %v1641
          %v1646 = vadd.f32 %v1610, %v1641
          %v1647 = vadd.f32 %v1611, %v1641
          %v1648 = vadd.f32 %v1612, %v1641
          %v1649 = vadd.f32 %v1613, %v1641
          %v1650 = vadd.f32 %v1614, %v1641
          %v1651 = vadd.f32 %v1615, %v1641
          %v1652 = vadd.f32 %v1616, %v1641
          %v1653 = vadd.f32 %v1617, %v1641
          %v1654 = vadd.f32 %v1618, %v1641
          %v1655 = vadd.f32 %v1619, %v1641
          %v1656 = vadd.f32 %v1620, %v1641
          %v1657 = vadd.f32 %v1621, %v1641
          %v1658 = vadd.f32 %v1622, %v1641
          %v1659 = vadd.f32 %v1623, %v1641
          %v1660 = vadd.f32 %v1624, %v1641
          %v1661 = vadd.f32 %v1625, %v1641
          %v1662 = vadd.f32 %v1626, %v1641
          %v1663 = vadd.f32 %v1627, %v1641
          %v1664 = vadd.f32 %v1628, %v1641
          %v1665 = vadd.f32 %v1629, %v1641
          %v1666 = vadd.f32 %v1630, %v1641
          %v1667 = vadd.f32 %v1631, %v1641
          %v1668 = vadd.f32 %v1632, %v1641
          %v1669 = vadd.f32 %v1633, %v1641
          %v1670 = vadd.f32 %v1634, %v1641
          %v1671 = vadd.f32 %v1635, %v1641
          %v1672 = vadd.f32 %v1636, %v1641
          %v1673 = vadd.f32 %v1637, %v1641
          %v1674 = vpack.c.bf16 %v1643, %v1642
          %v1675 = vpack.c.bf16 %v1645, %v1644
          %v1676 = vpack.c.bf16 %v1647, %v1646
          %v1677 = vpack.c.bf16 %v1649, %v1648
          %v1678 = vpack.c.bf16 %v1651, %v1650
          %v1679 = vpack.c.bf16 %v1653, %v1652
          %v1680 = vpack.c.bf16 %v1655, %v1654
          %v1681 = vpack.c.bf16 %v1657, %v1656
          %v1682 = vpack.c.bf16 %v1659, %v1658
          %v1683 = vpack.c.bf16 %v1661, %v1660
          %v1684 = vpack.c.bf16 %v1663, %v1662
          %v1685 = vpack.c.bf16 %v1665, %v1664
          %v1686 = vpack.c.bf16 %v1667, %v1666
          %v1687 = vpack.c.bf16 %v1669, %v1668
          %v1688 = vpack.c.bf16 %v1671, %v1670
          %v1689 = vpack.c.bf16 %v1673, %v1672
          %v1706 = vunpack.c.l.b16 %v1674
          %v1707 = vunpack.c.h.b16 %v1674
          %v1708 = vunpack.c.l.b16 %v1675
          %v1709 = vunpack.c.h.b16 %v1675
          %v1710 = vunpack.c.l.b16 %v1676
          %v1711 = vunpack.c.h.b16 %v1676
          %v1712 = vunpack.c.l.b16 %v1677
          %v1713 = vunpack.c.h.b16 %v1677
          %v1714 = vunpack.c.l.b16 %v1678
          %v1715 = vunpack.c.h.b16 %v1678
          %v1716 = vunpack.c.l.b16 %v1679
          %v1717 = vunpack.c.h.b16 %v1679
          %v1718 = vunpack.c.l.b16 %v1680
          %v1719 = vunpack.c.h.b16 %v1680
          %v1720 = vunpack.c.l.b16 %v1681
          %v1721 = vunpack.c.h.b16 %v1681
          %v1722 = vunpack.c.l.b16 %v1682
          %v1723 = vunpack.c.h.b16 %v1682
          %v1724 = vunpack.c.l.b16 %v1683
          %v1725 = vunpack.c.h.b16 %v1683
          %v1726 = vunpack.c.l.b16 %v1684
          %v1727 = vunpack.c.h.b16 %v1684
          %v1728 = vunpack.c.l.b16 %v1685
          %v1729 = vunpack.c.h.b16 %v1685
          %v1730 = vunpack.c.l.b16 %v1686
          %v1731 = vunpack.c.h.b16 %v1686
          %v1732 = vunpack.c.l.b16 %v1687
          %v1733 = vunpack.c.h.b16 %v1687
          %v1734 = vunpack.c.l.b16 %v1688
          %v1735 = vunpack.c.h.b16 %v1688
          %v1736 = vunpack.c.l.b16 %v1689
          %v1737 = vunpack.c.h.b16 %v1689
          %v1738 = vpack.c.b16 %v1706, %v1706
          %v1739 = vpack.c.b16 %v1707, %v1707
          %v1740 = vpack.c.b16 %v1708, %v1708
          %v1741 = vpack.c.b16 %v1709, %v1709
          %v1742 = vpack.c.b16 %v1710, %v1710
          %v1743 = vpack.c.b16 %v1711, %v1711
          %v1744 = vpack.c.b16 %v1712, %v1712
          %v1745 = vpack.c.b16 %v1713, %v1713
          %v1746 = vpack.c.b16 %v1714, %v1714
          %v1747 = vpack.c.b16 %v1715, %v1715
          %v1748 = vpack.c.b16 %v1716, %v1716
          %v1749 = vpack.c.b16 %v1717, %v1717
          %v1750 = vpack.c.b16 %v1718, %v1718
          %v1751 = vpack.c.b16 %v1719, %v1719
          %v1752 = vpack.c.b16 %v1720, %v1720
          %v1753 = vpack.c.b16 %v1721, %v1721
          %v1754 = vpack.c.b16 %v1722, %v1722
          %v1755 = vpack.c.b16 %v1723, %v1723
          %v1756 = vpack.c.b16 %v1724, %v1724
          %v1757 = vpack.c.b16 %v1725, %v1725
          %v1758 = vpack.c.b16 %v1726, %v1726
          %v1759 = vpack.c.b16 %v1727, %v1727
          %v1760 = vpack.c.b16 %v1728, %v1728
          %v1761 = vpack.c.b16 %v1729, %v1729
          %v1762 = vpack.c.b16 %v1730, %v1730
          %v1763 = vpack.c.b16 %v1731, %v1731
          %v1764 = vpack.c.b16 %v1732, %v1732
          %v1765 = vpack.c.b16 %v1733, %v1733
          %v1766 = vpack.c.b16 %v1734, %v1734
          %v1767 = vpack.c.b16 %v1735, %v1735
          %v1768 = vpack.c.b16 %v1736, %v1736
          %v1769 = vpack.c.b16 %v1737, %v1737
          %1802 = vst [vmem:[%s384] sm:$0xf] %v1738
          %1803 = vst [vmem:[%s384 + $0x4] sm:$0xf] %v1739
          %1804 = vst [vmem:[%s384 + $0x8] sm:$0xf] %v1740
          %1805 = vst [vmem:[%s384 + $0xc] sm:$0xf] %v1741
          %1806 = vst [vmem:[%s384 + $0x10] sm:$0xf] %v1742
          %1807 = vst [vmem:[%s384 + $0x14] sm:$0xf] %v1743
          %1808 = vst [vmem:[%s384 + $0x18] sm:$0xf] %v1744
          %1809 = vst [vmem:[%s384 + $0x1c] sm:$0xf] %v1745
          %1810 = vst [vmem:[%s384 + $0x20] sm:$0xf] %v1746
          %1811 = vst [vmem:[%s384 + $0x24] sm:$0xf] %v1747
          %1812 = vst [vmem:[%s384 + $0x28] sm:$0xf] %v1748
          %1813 = vst [vmem:[%s384 + $0x2c] sm:$0xf] %v1749
          %1814 = vst [vmem:[%s384 + $0x30] sm:$0xf] %v1750
          %1815 = vst [vmem:[%s384 + $0x34] sm:$0xf] %v1751
          %1816 = vst [vmem:[%s384 + $0x38] sm:$0xf] %v1752
          %1817 = vst [vmem:[%s384 + $0x3c] sm:$0xf] %v1753
          %1818 = vst [vmem:[%s384 + $0x40] sm:$0xf] %v1754
          %1819 = vst [vmem:[%s384 + $0x44] sm:$0xf] %v1755
          %1820 = vst [vmem:[%s384 + $0x48] sm:$0xf] %v1756
          %1821 = vst [vmem:[%s384 + $0x4c] sm:$0xf] %v1757
          %1822 = vst [vmem:[%s384 + $0x50] sm:$0xf] %v1758
          %1823 = vst [vmem:[%s384 + $0x54] sm:$0xf] %v1759
          %1824 = vst [vmem:[%s384 + $0x58] sm:$0xf] %v1760
          %1825 = vst [vmem:[%s384 + $0x5c] sm:$0xf] %v1761
          %1826 = vst [vmem:[%s384 + $0x60] sm:$0xf] %v1762
          %1827 = vst [vmem:[%s384 + $0x64] sm:$0xf] %v1763
          %1828 = vst [vmem:[%s384 + $0x68] sm:$0xf] %v1764
          %1829 = vst [vmem:[%s384 + $0x6c] sm:$0xf] %v1765
          %1830 = vst [vmem:[%s384 + $0x70] sm:$0xf] %v1766
          %1831 = vst [vmem:[%s384 + $0x74] sm:$0xf] %v1767
          %1832 = vst [vmem:[%s384 + $0x78] sm:$0xf] %v1768
          %1833 = vst [vmem:[%s384 + $0x7c] sm:$0xf] %v1769
          %v1834 = vld [vmem:[%s908] sm:$0xff]
          %v1835 = vld [vmem:[%s908 + $0x8] sm:$0xff]
          %v1836 = vld [vmem:[%s908 + $0x10] sm:$0xff]
          %v1837 = vld [vmem:[%s908 + $0x18] sm:$0xff]
          %v1838 = vld [vmem:[%s908 + $0x20] sm:$0xff]
          %v1839 = vld [vmem:[%s908 + $0x28] sm:$0xff]
          %v1840 = vld [vmem:[%s908 + $0x30] sm:$0xff]
          %v1841 = vld [vmem:[%s908 + $0x38] sm:$0xff]
          %v1842 = vld [vmem:[%s908 + $0x40] sm:$0xff]
          %v1843 = vld [vmem:[%s908 + $0x48] sm:$0xff]
          %v1844 = vld [vmem:[%s908 + $0x50] sm:$0xff]
          %v1845 = vld [vmem:[%s908 + $0x58] sm:$0xff]
          %v1846 = vld [vmem:[%s908 + $0x60] sm:$0xff]
          %v1847 = vld [vmem:[%s908 + $0x68] sm:$0xff]
          %v1848 = vld [vmem:[%s908 + $0x70] sm:$0xff]
          %v1849 = vld [vmem:[%s908 + $0x78] sm:$0xff]
          %v1850 = vld [vmem:[%s908 + $0x80] sm:$0xff]
          %v1851 = vld [vmem:[%s908 + $0x88] sm:$0xff]
          %v1852 = vld [vmem:[%s908 + $0x90] sm:$0xff]
          %v1853 = vld [vmem:[%s908 + $0x98] sm:$0xff]
          %v1854 = vld [vmem:[%s908 + $0xa0] sm:$0xff]
          %v1855 = vld [vmem:[%s908 + $0xa8] sm:$0xff]
          %v1856 = vld [vmem:[%s908 + $0xb0] sm:$0xff]
          %v1857 = vld [vmem:[%s908 + $0xb8] sm:$0xff]
          %v1858 = vld [vmem:[%s908 + $0xc0] sm:$0xff]
          %v1859 = vld [vmem:[%s908 + $0xc8] sm:$0xff]
          %v1860 = vld [vmem:[%s908 + $0xd0] sm:$0xff]
          %v1861 = vld [vmem:[%s908 + $0xd8] sm:$0xff]
          %v1862 = vld [vmem:[%s908 + $0xe0] sm:$0xff]
          %v1863 = vld [vmem:[%s908 + $0xe8] sm:$0xff]
          %v1864 = vld [vmem:[%s908 + $0xf0] sm:$0xff]
          %v1865 = vld [vmem:[%s908 + $0xf8] sm:$0xff]
          %v1866 = vlaneseq
          %v1867 = vshrl.u32 %v1866, 7
          %v1868 = vsub.s32 1, %v1867
          %v1869 = vrot.slane %v1605, %v1868
          %v1870 = vadd.f32 %v1834, %v1869
          %v1871 = vadd.f32 %v1835, %v1869
          %v1872 = vadd.f32 %v1836, %v1869
          %v1873 = vadd.f32 %v1837, %v1869
          %v1874 = vadd.f32 %v1838, %v1869
          %v1875 = vadd.f32 %v1839, %v1869
          %v1876 = vadd.f32 %v1840, %v1869
          %v1877 = vadd.f32 %v1841, %v1869
          %v1878 = vadd.f32 %v1842, %v1869
          %v1879 = vadd.f32 %v1843, %v1869
          %v1880 = vadd.f32 %v1844, %v1869
          %v1881 = vadd.f32 %v1845, %v1869
          %v1882 = vadd.f32 %v1846, %v1869
          %v1883 = vadd.f32 %v1847, %v1869
          %v1884 = vadd.f32 %v1848, %v1869
          %v1885 = vadd.f32 %v1849, %v1869
          %v1886 = vadd.f32 %v1850, %v1869
          %v1887 = vadd.f32 %v1851, %v1869
          %v1888 = vadd.f32 %v1852, %v1869
          %v1889 = vadd.f32 %v1853, %v1869
          %v1890 = vadd.f32 %v1854, %v1869
          %v1891 = vadd.f32 %v1855, %v1869
          %v1892 = vadd.f32 %v1856, %v1869
          %v1893 = vadd.f32 %v1857, %v1869
          %v1894 = vadd.f32 %v1858, %v1869
          %v1895 = vadd.f32 %v1859, %v1869
          %v1896 = vadd.f32 %v1860, %v1869
          %v1897 = vadd.f32 %v1861, %v1869
          %v1898 = vadd.f32 %v1862, %v1869
          %v1899 = vadd.f32 %v1863, %v1869
          %v1900 = vadd.f32 %v1864, %v1869
          %v1901 = vadd.f32 %v1865, %v1869
          %v1902 = vpack.c.bf16 %v1871, %v1870
          %v1903 = vpack.c.bf16 %v1873, %v1872
          %v1904 = vpack.c.bf16 %v1875, %v1874
          %v1905 = vpack.c.bf16 %v1877, %v1876
          %v1906 = vpack.c.bf16 %v1879, %v1878
          %v1907 = vpack.c.bf16 %v1881, %v1880
          %v1908 = vpack.c.bf16 %v1883, %v1882
          %v1909 = vpack.c.bf16 %v1885, %v1884
          %v1910 = vpack.c.bf16 %v1887, %v1886
          %v1911 = vpack.c.bf16 %v1889, %v1888
          %v1912 = vpack.c.bf16 %v1891, %v1890
          %v1913 = vpack.c.bf16 %v1893, %v1892
          %v1914 = vpack.c.bf16 %v1895, %v1894
          %v1915 = vpack.c.bf16 %v1897, %v1896
          %v1916 = vpack.c.bf16 %v1899, %v1898
          %v1917 = vpack.c.bf16 %v1901, %v1900
          %v1934 = vunpack.c.l.b16 %v1902
          %v1935 = vunpack.c.h.b16 %v1902
          %v1936 = vunpack.c.l.b16 %v1903
          %v1937 = vunpack.c.h.b16 %v1903
          %v1938 = vunpack.c.l.b16 %v1904
          %v1939 = vunpack.c.h.b16 %v1904
          %v1940 = vunpack.c.l.b16 %v1905
          %v1941 = vunpack.c.h.b16 %v1905
          %v1942 = vunpack.c.l.b16 %v1906
          %v1943 = vunpack.c.h.b16 %v1906
          %v1944 = vunpack.c.l.b16 %v1907
          %v1945 = vunpack.c.h.b16 %v1907
          %v1946 = vunpack.c.l.b16 %v1908
          %v1947 = vunpack.c.h.b16 %v1908
          %v1948 = vunpack.c.l.b16 %v1909
          %v1949 = vunpack.c.h.b16 %v1909
          %v1950 = vunpack.c.l.b16 %v1910
          %v1951 = vunpack.c.h.b16 %v1910
          %v1952 = vunpack.c.l.b16 %v1911
          %v1953 = vunpack.c.h.b16 %v1911
          %v1954 = vunpack.c.l.b16 %v1912
          %v1955 = vunpack.c.h.b16 %v1912
          %v1956 = vunpack.c.l.b16 %v1913
          %v1957 = vunpack.c.h.b16 %v1913
          %v1958 = vunpack.c.l.b16 %v1914
          %v1959 = vunpack.c.h.b16 %v1914
          %v1960 = vunpack.c.l.b16 %v1915
          %v1961 = vunpack.c.h.b16 %v1915
          %v1962 = vunpack.c.l.b16 %v1916
          %v1963 = vunpack.c.h.b16 %v1916
          %v1964 = vunpack.c.l.b16 %v1917
          %v1965 = vunpack.c.h.b16 %v1917
          %v1966 = vpack.c.b16 %v1934, %v1934
          %v1967 = vpack.c.b16 %v1935, %v1935
          %v1968 = vpack.c.b16 %v1936, %v1936
          %v1969 = vpack.c.b16 %v1937, %v1937
          %v1970 = vpack.c.b16 %v1938, %v1938
          %v1971 = vpack.c.b16 %v1939, %v1939
          %v1972 = vpack.c.b16 %v1940, %v1940
          %v1973 = vpack.c.b16 %v1941, %v1941
          %v1974 = vpack.c.b16 %v1942, %v1942
          %v1975 = vpack.c.b16 %v1943, %v1943
          %v1976 = vpack.c.b16 %v1944, %v1944
          %v1977 = vpack.c.b16 %v1945, %v1945
          %v1978 = vpack.c.b16 %v1946, %v1946
          %v1979 = vpack.c.b16 %v1947, %v1947
          %v1980 = vpack.c.b16 %v1948, %v1948
          %v1981 = vpack.c.b16 %v1949, %v1949
          %v1982 = vpack.c.b16 %v1950, %v1950
          %v1983 = vpack.c.b16 %v1951, %v1951
          %v1984 = vpack.c.b16 %v1952, %v1952
          %v1985 = vpack.c.b16 %v1953, %v1953
          %v1986 = vpack.c.b16 %v1954, %v1954
          %v1987 = vpack.c.b16 %v1955, %v1955
          %v1988 = vpack.c.b16 %v1956, %v1956
          %v1989 = vpack.c.b16 %v1957, %v1957
          %v1990 = vpack.c.b16 %v1958, %v1958
          %v1991 = vpack.c.b16 %v1959, %v1959
          %v1992 = vpack.c.b16 %v1960, %v1960
          %v1993 = vpack.c.b16 %v1961, %v1961
          %v1994 = vpack.c.b16 %v1962, %v1962
          %v1995 = vpack.c.b16 %v1963, %v1963
          %v1996 = vpack.c.b16 %v1964, %v1964
          %v1997 = vpack.c.b16 %v1965, %v1965
          %s2030 = scalar_lea.vmem %s384, 128 [#allocation11]
          %2031 = vst [vmem:[%s2030] sm:$0xf] %v1966
          %2032 = vst [vmem:[%s2030 + $0x4] sm:$0xf] %v1967
          %2033 = vst [vmem:[%s2030 + $0x8] sm:$0xf] %v1968
          %2034 = vst [vmem:[%s2030 + $0xc] sm:$0xf] %v1969
          %2035 = vst [vmem:[%s2030 + $0x10] sm:$0xf] %v1970
          %2036 = vst [vmem:[%s2030 + $0x14] sm:$0xf] %v1971
          %2037 = vst [vmem:[%s2030 + $0x18] sm:$0xf] %v1972
          %2038 = vst [vmem:[%s2030 + $0x1c] sm:$0xf] %v1973
          %2039 = vst [vmem:[%s2030 + $0x20] sm:$0xf] %v1974
          %2040 = vst [vmem:[%s2030 + $0x24] sm:$0xf] %v1975
          %2041 = vst [vmem:[%s2030 + $0x28] sm:$0xf] %v1976
          %2042 = vst [vmem:[%s2030 + $0x2c] sm:$0xf] %v1977
          %2043 = vst [vmem:[%s2030 + $0x30] sm:$0xf] %v1978
          %2044 = vst [vmem:[%s2030 + $0x34] sm:$0xf] %v1979
          %2045 = vst [vmem:[%s2030 + $0x38] sm:$0xf] %v1980
          %2046 = vst [vmem:[%s2030 + $0x3c] sm:$0xf] %v1981
          %2047 = vst [vmem:[%s2030 + $0x40] sm:$0xf] %v1982
          %2048 = vst [vmem:[%s2030 + $0x44] sm:$0xf] %v1983
          %2049 = vst [vmem:[%s2030 + $0x48] sm:$0xf] %v1984
          %2050 = vst [vmem:[%s2030 + $0x4c] sm:$0xf] %v1985
          %2051 = vst [vmem:[%s2030 + $0x50] sm:$0xf] %v1986
          %2052 = vst [vmem:[%s2030 + $0x54] sm:$0xf] %v1987
          %2053 = vst [vmem:[%s2030 + $0x58] sm:$0xf] %v1988
          %2054 = vst [vmem:[%s2030 + $0x5c] sm:$0xf] %v1989
          %2055 = vst [vmem:[%s2030 + $0x60] sm:$0xf] %v1990
          %2056 = vst [vmem:[%s2030 + $0x64] sm:$0xf] %v1991
          %2057 = vst [vmem:[%s2030 + $0x68] sm:$0xf] %v1992
          %2058 = vst [vmem:[%s2030 + $0x6c] sm:$0xf] %v1993
          %2059 = vst [vmem:[%s2030 + $0x70] sm:$0xf] %v1994
          %2060 = vst [vmem:[%s2030 + $0x74] sm:$0xf] %v1995
          %2061 = vst [vmem:[%s2030 + $0x78] sm:$0xf] %v1996
          %2062 = vst [vmem:[%s2030 + $0x7c] sm:$0xf] %v1997
          %v2063 = vld [vmem:[%s1279] sm:$0xff]
          %v2064 = vld [vmem:[%s1279 + $0x8] sm:$0xff]
          %v2065 = vld [vmem:[%s1279 + $0x10] sm:$0xff]
          %v2066 = vld [vmem:[%s1279 + $0x18] sm:$0xff]
          %v2067 = vld [vmem:[%s1279 + $0x20] sm:$0xff]
          %v2068 = vld [vmem:[%s1279 + $0x28] sm:$0xff]
          %v2069 = vld [vmem:[%s1279 + $0x30] sm:$0xff]
          %v2070 = vld [vmem:[%s1279 + $0x38] sm:$0xff]
          %v2071 = vld [vmem:[%s1279 + $0x40] sm:$0xff]
          %v2072 = vld [vmem:[%s1279 + $0x48] sm:$0xff]
          %v2073 = vld [vmem:[%s1279 + $0x50] sm:$0xff]
          %v2074 = vld [vmem:[%s1279 + $0x58] sm:$0xff]
          %v2075 = vld [vmem:[%s1279 + $0x60] sm:$0xff]
          %v2076 = vld [vmem:[%s1279 + $0x68] sm:$0xff]
          %v2077 = vld [vmem:[%s1279 + $0x70] sm:$0xff]
          %v2078 = vld [vmem:[%s1279 + $0x78] sm:$0xff]
          %v2079 = vld [vmem:[%s1279 + $0x80] sm:$0xff]
          %v2080 = vld [vmem:[%s1279 + $0x88] sm:$0xff]
          %v2081 = vld [vmem:[%s1279 + $0x90] sm:$0xff]
          %v2082 = vld [vmem:[%s1279 + $0x98] sm:$0xff]
          %v2083 = vld [vmem:[%s1279 + $0xa0] sm:$0xff]
          %v2084 = vld [vmem:[%s1279 + $0xa8] sm:$0xff]
          %v2085 = vld [vmem:[%s1279 + $0xb0] sm:$0xff]
          %v2086 = vld [vmem:[%s1279 + $0xb8] sm:$0xff]
          %v2087 = vld [vmem:[%s1279 + $0xc0] sm:$0xff]
          %v2088 = vld [vmem:[%s1279 + $0xc8] sm:$0xff]
          %v2089 = vld [vmem:[%s1279 + $0xd0] sm:$0xff]
          %v2090 = vld [vmem:[%s1279 + $0xd8] sm:$0xff]
          %v2091 = vld [vmem:[%s1279 + $0xe0] sm:$0xff]
          %v2092 = vld [vmem:[%s1279 + $0xe8] sm:$0xff]
          %v2093 = vld [vmem:[%s1279 + $0xf0] sm:$0xff]
          %v2094 = vld [vmem:[%s1279 + $0xf8] sm:$0xff]
          %v2095 = vlaneseq
          %v2096 = vshrl.u32 %v2095, 7
          %v2097 = vsub.s32 2, %v2096
          %v2098 = vrot.slane %v1605, %v2097
          %v2099 = vadd.f32 %v2063, %v2098
          %v2100 = vadd.f32 %v2064, %v2098
          %v2101 = vadd.f32 %v2065, %v2098
          %v2102 = vadd.f32 %v2066, %v2098
          %v2103 = vadd.f32 %v2067, %v2098
          %v2104 = vadd.f32 %v2068, %v2098
          %v2105 = vadd.f32 %v2069, %v2098
          %v2106 = vadd.f32 %v2070, %v2098
          %v2107 = vadd.f32 %v2071, %v2098
          %v2108 = vadd.f32 %v2072, %v2098
          %v2109 = vadd.f32 %v2073, %v2098
          %v2110 = vadd.f32 %v2074, %v2098
          %v2111 = vadd.f32 %v2075, %v2098
          %v2112 = vadd.f32 %v2076, %v2098
          %v2113 = vadd.f32 %v2077, %v2098
          %v2114 = vadd.f32 %v2078, %v2098
          %v2115 = vadd.f32 %v2079, %v2098
          %v2116 = vadd.f32 %v2080, %v2098
          %v2117 = vadd.f32 %v2081, %v2098
          %v2118 = vadd.f32 %v2082, %v2098
          %v2119 = vadd.f32 %v2083, %v2098
          %v2120 = vadd.f32 %v2084, %v2098
          %v2121 = vadd.f32 %v2085, %v2098
          %v2122 = vadd.f32 %v2086, %v2098
          %v2123 = vadd.f32 %v2087, %v2098
          %v2124 = vadd.f32 %v2088, %v2098
          %v2125 = vadd.f32 %v2089, %v2098
          %v2126 = vadd.f32 %v2090, %v2098
          %v2127 = vadd.f32 %v2091, %v2098
          %v2128 = vadd.f32 %v2092, %v2098
          %v2129 = vadd.f32 %v2093, %v2098
          %v2130 = vadd.f32 %v2094, %v2098
          %v2131 = vpack.c.bf16 %v2100, %v2099
          %v2132 = vpack.c.bf16 %v2102, %v2101
          %v2133 = vpack.c.bf16 %v2104, %v2103
          %v2134 = vpack.c.bf16 %v2106, %v2105
          %v2135 = vpack.c.bf16 %v2108, %v2107
          %v2136 = vpack.c.bf16 %v2110, %v2109
          %v2137 = vpack.c.bf16 %v2112, %v2111
          %v2138 = vpack.c.bf16 %v2114, %v2113
          %v2139 = vpack.c.bf16 %v2116, %v2115
          %v2140 = vpack.c.bf16 %v2118, %v2117
          %v2141 = vpack.c.bf16 %v2120, %v2119
          %v2142 = vpack.c.bf16 %v2122, %v2121
          %v2143 = vpack.c.bf16 %v2124, %v2123
          %v2144 = vpack.c.bf16 %v2126, %v2125
          %v2145 = vpack.c.bf16 %v2128, %v2127
          %v2146 = vpack.c.bf16 %v2130, %v2129
          %v2163 = vunpack.c.l.b16 %v2131
          %v2164 = vunpack.c.h.b16 %v2131
          %v2165 = vunpack.c.l.b16 %v2132
          %v2166 = vunpack.c.h.b16 %v2132
          %v2167 = vunpack.c.l.b16 %v2133
          %v2168 = vunpack.c.h.b16 %v2133
          %v2169 = vunpack.c.l.b16 %v2134
          %v2170 = vunpack.c.h.b16 %v2134
          %v2171 = vunpack.c.l.b16 %v2135
          %v2172 = vunpack.c.h.b16 %v2135
          %v2173 = vunpack.c.l.b16 %v2136
          %v2174 = vunpack.c.h.b16 %v2136
          %v2175 = vunpack.c.l.b16 %v2137
          %v2176 = vunpack.c.h.b16 %v2137
          %v2177 = vunpack.c.l.b16 %v2138
          %v2178 = vunpack.c.h.b16 %v2138
          %v2179 = vunpack.c.l.b16 %v2139
          %v2180 = vunpack.c.h.b16 %v2139
          %v2181 = vunpack.c.l.b16 %v2140
          %v2182 = vunpack.c.h.b16 %v2140
          %v2183 = vunpack.c.l.b16 %v2141
          %v2184 = vunpack.c.h.b16 %v2141
          %v2185 = vunpack.c.l.b16 %v2142
          %v2186 = vunpack.c.h.b16 %v2142
          %v2187 = vunpack.c.l.b16 %v2143
          %v2188 = vunpack.c.h.b16 %v2143
          %v2189 = vunpack.c.l.b16 %v2144
          %v2190 = vunpack.c.h.b16 %v2144
          %v2191 = vunpack.c.l.b16 %v2145
          %v2192 = vunpack.c.h.b16 %v2145
          %v2193 = vunpack.c.l.b16 %v2146
          %v2194 = vunpack.c.h.b16 %v2146
          %v2195 = vpack.c.b16 %v2163, %v2163
          %v2196 = vpack.c.b16 %v2164, %v2164
          %v2197 = vpack.c.b16 %v2165, %v2165
          %v2198 = vpack.c.b16 %v2166, %v2166
          %v2199 = vpack.c.b16 %v2167, %v2167
          %v2200 = vpack.c.b16 %v2168, %v2168
          %v2201 = vpack.c.b16 %v2169, %v2169
          %v2202 = vpack.c.b16 %v2170, %v2170
          %v2203 = vpack.c.b16 %v2171, %v2171
          %v2204 = vpack.c.b16 %v2172, %v2172
          %v2205 = vpack.c.b16 %v2173, %v2173
          %v2206 = vpack.c.b16 %v2174, %v2174
          %v2207 = vpack.c.b16 %v2175, %v2175
          %v2208 = vpack.c.b16 %v2176, %v2176
          %v2209 = vpack.c.b16 %v2177, %v2177
          %v2210 = vpack.c.b16 %v2178, %v2178
          %v2211 = vpack.c.b16 %v2179, %v2179
          %v2212 = vpack.c.b16 %v2180, %v2180
          %v2213 = vpack.c.b16 %v2181, %v2181
          %v2214 = vpack.c.b16 %v2182, %v2182
          %v2215 = vpack.c.b16 %v2183, %v2183
          %v2216 = vpack.c.b16 %v2184, %v2184
          %v2217 = vpack.c.b16 %v2185, %v2185
          %v2218 = vpack.c.b16 %v2186, %v2186
          %v2219 = vpack.c.b16 %v2187, %v2187
          %v2220 = vpack.c.b16 %v2188, %v2188
          %v2221 = vpack.c.b16 %v2189, %v2189
          %v2222 = vpack.c.b16 %v2190, %v2190
          %v2223 = vpack.c.b16 %v2191, %v2191
          %v2224 = vpack.c.b16 %v2192, %v2192
          %v2225 = vpack.c.b16 %v2193, %v2193
          %v2226 = vpack.c.b16 %v2194, %v2194
          %s2259 = scalar_lea.vmem %s384, 256 [#allocation11]
          %2260 = vst [vmem:[%s2259] sm:$0xf] %v2195
          %2261 = vst [vmem:[%s2259 + $0x4] sm:$0xf] %v2196
          %2262 = vst [vmem:[%s2259 + $0x8] sm:$0xf] %v2197
          %2263 = vst [vmem:[%s2259 + $0xc] sm:$0xf] %v2198
          %2264 = vst [vmem:[%s2259 + $0x10] sm:$0xf] %v2199
          %2265 = vst [vmem:[%s2259 + $0x14] sm:$0xf] %v2200
          %2266 = vst [vmem:[%s2259 + $0x18] sm:$0xf] %v2201
          %2267 = vst [vmem:[%s2259 + $0x1c] sm:$0xf] %v2202
          %2268 = vst [vmem:[%s2259 + $0x20] sm:$0xf] %v2203
          %2269 = vst [vmem:[%s2259 + $0x24] sm:$0xf] %v2204
          %2270 = vst [vmem:[%s2259 + $0x28] sm:$0xf] %v2205
          %2271 = vst [vmem:[%s2259 + $0x2c] sm:$0xf] %v2206
          %2272 = vst [vmem:[%s2259 + $0x30] sm:$0xf] %v2207
          %2273 = vst [vmem:[%s2259 + $0x34] sm:$0xf] %v2208
          %2274 = vst [vmem:[%s2259 + $0x38] sm:$0xf] %v2209
          %2275 = vst [vmem:[%s2259 + $0x3c] sm:$0xf] %v2210
          %2276 = vst [vmem:[%s2259 + $0x40] sm:$0xf] %v2211
          %2277 = vst [vmem:[%s2259 + $0x44] sm:$0xf] %v2212
          %2278 = vst [vmem:[%s2259 + $0x48] sm:$0xf] %v2213
          %2279 = vst [vmem:[%s2259 + $0x4c] sm:$0xf] %v2214
          %2280 = vst [vmem:[%s2259 + $0x50] sm:$0xf] %v2215
          %2281 = vst [vmem:[%s2259 + $0x54] sm:$0xf] %v2216
          %2282 = vst [vmem:[%s2259 + $0x58] sm:$0xf] %v2217
          %2283 = vst [vmem:[%s2259 + $0x5c] sm:$0xf] %v2218
          %2284 = vst [vmem:[%s2259 + $0x60] sm:$0xf] %v2219
          %2285 = vst [vmem:[%s2259 + $0x64] sm:$0xf] %v2220
          %2286 = vst [vmem:[%s2259 + $0x68] sm:$0xf] %v2221
          %2287 = vst [vmem:[%s2259 + $0x6c] sm:$0xf] %v2222
          %2288 = vst [vmem:[%s2259 + $0x70] sm:$0xf] %v2223
          %2289 = vst [vmem:[%s2259 + $0x74] sm:$0xf] %v2224
          %2290 = vst [vmem:[%s2259 + $0x78] sm:$0xf] %v2225
          %2291 = vst [vmem:[%s2259 + $0x7c] sm:$0xf] %v2226
        $region64: #{tpu_custom_call.1} parent=39 // pred_fallthru
          _
        %s2292 = sand.u32 %s192, 1
        %s2293 = scalar_lea.sflag [#allocation5], %s2292
        %s2294 = sand.u32 %s192, 1
        %s2295 = smul.addr %s2294, 384
        %s2296 = scalar_lea.vmem [#allocation11], %s2295
        // Predicated region
        $region65: #{tpu_custom_call.1} parent=39 // pred_check
          %p2297 = pneg %p202
        $region66: #{tpu_custom_call.1} parent=39 // pred_check_branch
          %2299 = sbr.rel (%p2297) target = $region68
        $region67: #{tpu_custom_call.1} parent=39 // pred_region
          #allocation13 [shape = 'u32[6]{0}', space=smem, size = 0x18, scoped, tag = 'DMA stride descriptor']
          %s2300 = smul.u32 32, %s32
          %s2302 = ssub.s32 6144, 6144
          %2303 = vsyncadd %s2293, %s2302
          %s2304 = smul.addr %s31, 64
          %s2305 = sadd.s32 %s2300, %s2304
          %s2306 = smul.addr %s2305, 64
          %s2307 = scalar_lea.hbm %s5, %s2306
          %s2309 = sshll.u32 1, 14
          %s2310 = sxor.u32 4294967295, %s2309
          %s2313 = sshll.u32 7, 18
          %s2314 = sxor.u32 4294967295, %s2313
          %s2315 = sand.u32 0, %s2314
          %s2317 = sor.u32 %s2315, 0
          %s2318 = sshll.u32 %s2296, 4
          %s2319 = int_to_ptr.vmem [resolvable:$true] %s2318
          %2325 = sst [smem:[#allocation13]] 2048
          %s2326 = scalar_lea.smem [#allocation13], 1
          %2327 = sst [smem:[%s2326]] 8192
          %s2328 = scalar_lea.smem [#allocation13], 2
          %2329 = sst [smem:[%s2328]] 32
          %s2330 = scalar_lea.smem [#allocation13], 3
          %2331 = sst [smem:[%s2330]] 64
          %s2332 = scalar_lea.smem [#allocation13], 4
          %2333 = sst [smem:[%s2332]] 64
          %s2334 = scalar_lea.smem [#allocation13], 5
          %2335 = sst [smem:[%s2334]] 4
          %2337 = dma.general %s2319, 6144, %s2307, %s2293, 131072, [#allocation13], %s2317, 0
        $region68: #{tpu_custom_call.1} parent=39 // pred_fallthru
          _
      $region40: #{tpu_custom_call.1} parent=5 // pred_fallthru
        _
      %p2338 = scmp.le.s32.totalorder 2, %s21
      // Predicated region
      $region69: #{tpu_custom_call.1} parent=5 // pred_check
        %p2339 = pneg %p2338
      $region70: #{tpu_custom_call.1} parent=5 // pred_check_branch
        %2341 = sbr.rel (%p2339) target = $region72
      $region71: #{tpu_custom_call.1} parent=5 // pred_region
        %s2342 = ssub.s32 %s21, 2
        // Predicated region
        $region73: #{tpu_custom_call.1} parent=71 // pred_check
          %p2343 = pneg %p208
        $region74: #{tpu_custom_call.1} parent=71 // pred_check_branch
          %2345 = sbr.rel (%p2343) target = $region76
        $region75: #{tpu_custom_call.1} parent=71 // pred_region
          %s2346 = sand.u32 %s193, 1
          %s2347 = scalar_lea.sflag [#allocation5], %s2346
          %s2348 = sand.u32 %s193, 1
          %s2349 = smul.addr %s2348, 384
          %s2350 = scalar_lea.vmem [#allocation11], %s2349
          %2351 = dma.done %s2347, 6144
        $region76: #{tpu_custom_call.1} parent=71 // pred_fallthru
          _
      $region72: #{tpu_custom_call.1} parent=5 // pred_fallthru
        _
    $region6: #{tpu_custom_call.1} parent=1 // loop_footer
      %s25 = sadd.s32 1, %s21
    $region7: #{tpu_custom_call.1} parent=1 // loop_footer_branch
      %20 = sbr.rel target = $region3
    $region8: #{tpu_custom_call.1} parent=1 // loop_exit
      _
    %2352 = vsyncpa [#allocation4], 1
    %s2353 = scalar_lea.sflag [#allocation4], 1
    %2354 = vsyncpa %s2353, 1
    %2355 = vsyncpa [#allocation7], 1
    %s2356 = scalar_lea.sflag [#allocation7], 1
    %2357 = vsyncpa %s2356, 1
    %2358 = vsyncpa [#allocation10], 1
    %2359 = vsyncpa [#allocation5], 1
    %s2360 = scalar_lea.sflag [#allocation5], 1
    %2361 = vsyncpa %s2360, 1

</llo_original>
